<compile_context>
chip_gen: v7x
topology: tpu7x:2x2x1
jax: 0.10.0
libtpu: 0.0.40
codegen_flags: <defaults>
</compile_context>

<pallas_src>
import jax
import jax.numpy as jnp
import numpy as np
from jax.experimental import pallas as pl
from jax.experimental.pallas import tpu as pltpu


def lstm_kernel(x_ref, len_ref, wih_ref, whh_ref, b_ref, wlin_ref, blin_ref,
                out_ref, xw_scr, h_scr, c_scr, hl_scr):
    # x_ref:    (T*B, E)   time-major rows (row = t*B + b), f32 or bf16
    # len_ref:  (B, 1)     int32 sequence lengths
    # wih_ref:  (E, 4H)    W_ih^T               (matmul dtype)
    # whh_ref:  (H, 4H)    W_hh^T               (matmul dtype)
    # b_ref:    (1, 4H)    b_ih + b_hh          (f32)
    # wlin_ref: (1, H)     final linear weight  (f32, row vector)
    # blin_ref: (1, 1)     final linear bias    (f32)
    # out_ref:  (B, 1)     f32
    # xw_scr:   (T*B, 4H)  f32  precomputed input projection
    # h_scr, c_scr, hl_scr: (B, H) f32
    TB = x_ref.shape[0]
    B = h_scr.shape[0]
    H = whh_ref.shape[0]
    T = TB // B

    # (1) One big MXU matmul for the whole input projection, bias folded in.
    xw_scr[...] = (jnp.dot(x_ref[...], wih_ref[...],
                           preferred_element_type=jnp.float32)
                   + b_ref[...])

    h_scr[...] = jnp.zeros_like(h_scr)
    c_scr[...] = jnp.zeros_like(c_scr)
    hl_scr[...] = jnp.zeros_like(hl_scr)

    # (2) Hoist loop-invariant loads / broadcasts out of the serial region.
    whh = whh_ref[...]                 # (H, 4H)
    lm1 = len_ref[...] - 1             # (B, 1)  last valid step per row
    mm_dtype = whh.dtype

    def step(t, carry):
        row = pl.multiple_of(t * B, B)
        xw_t = xw_scr[pl.ds(row, B), :]                        # (B, 4H) f32
        gates = xw_t + jnp.dot(h_scr[...].astype(mm_dtype), whh,
                               preferred_element_type=jnp.float32)
        # (3) full-width activations; slice i/f/g/o afterwards (PyTorch order i,f,g,o)
        sig = jax.nn.sigmoid(gates)                            # (B, 4H)
        th = jnp.tanh(gates)                                   # (B, 4H)
        i = sig[:, 0:H]
        f = sig[:, H:2 * H]
        g = th[:, 2 * H:3 * H]
        o = sig[:, 3 * H:4 * H]
        c = f * c_scr[...] + i * g
        h = o * jnp.tanh(c)
        c_scr[...] = c
        h_scr[...] = h
        # capture h at each row's final valid timestep (t == len-1)
        hl_scr[...] = jnp.where(lm1 == t, h, hl_scr[...])
        return carry

    # (9) bounded unroll: fully unrolled at T=8, capped for long sequences.
    jax.lax.fori_loop(0, T, step, 0, unroll=min(T, 8))

    # (10) final projection as VPU multiply + lane reduce (skip the N=1 MXU matmul)
    out_ref[...] = (jnp.sum(hl_scr[...] * wlin_ref[...], axis=-1, keepdims=True)
                    + blin_ref[...])


def lstm_variable_input_forward(tokens, lengths, params,
                                matmul_dtype=jnp.float32):
    """tokens: (B, T) int32, lengths: (B,) int32 -> (B, 1) float32.

    matmul_dtype=jnp.bfloat16 feeds the MXU in bf16 (v6e/v7x native) while all
    recurrent state / elementwise math stays float32.
    """
    emb_table = params["emb"]                 # (V, E), row 0 zeroed (padding_idx=0)
    x = emb_table[tokens]                     # (B, T, E) embedding lookup (XLA glue)
    # Dropout(0.3) -> identity (eval semantics).

    B, T = tokens.shape
    E = emb_table.shape[1]
    H = params["whh_t"].shape[0]

    # (4) pad batch to a multiple of 8 sublanes; padded rows are discarded below.
    B_pad = max(8, ((B + 7) // 8) * 8)
    x_tm = jnp.swapaxes(x, 0, 1)              # (T, B, E) time-major
    if B_pad != B:
        x_tm = jnp.pad(x_tm, ((0, 0), (0, B_pad - B), (0, 0)))
        lengths_p = jnp.concatenate(
            [lengths.astype(jnp.int32),
             jnp.ones((B_pad - B,), jnp.int32)])
    else:
        lengths_p = lengths.astype(jnp.int32)

    x2d = x_tm.reshape(T * B_pad, E).astype(matmul_dtype)   # (T*B_pad, E)
    lengths2d = lengths_p.reshape(B_pad, 1)

    wih = params["wih_t"].astype(matmul_dtype)
    whh = params["whh_t"].astype(matmul_dtype)

    vmem = pl.BlockSpec(memory_space=pltpu.MemorySpace.VMEM)
    out = pl.pallas_call(
        lstm_kernel,
        out_shape=jax.ShapeDtypeStruct((B_pad, 1), jnp.float32),
        in_specs=[vmem] * 7,
        out_specs=vmem,
        scratch_shapes=[
            pltpu.VMEM((T * B_pad, 4 * H), jnp.float32),   # xw (hoisted projection)
            pltpu.VMEM((B_pad, H), jnp.float32),           # h
            pltpu.VMEM((B_pad, H), jnp.float32),           # c
            pltpu.VMEM((B_pad, H), jnp.float32),           # h at last valid step
        ],
    )(x2d, lengths2d, wih, whh, params["bias"],
      params["wlin_row"], params["blin"])
    return out[:B]


def reference_forward(tokens, lengths, params):
    """Pure-JAX f32 reference mirroring PyTorch semantics."""
    x = params["emb"][tokens]                    # (B, T, E)
    B, T, _ = x.shape
    H = params["whh_t"].shape[0]

    def step(carry, x_t):
        h, c = carry
        g = x_t @ params["wih_t"] + h @ params["whh_t"] + params["bias"]
        i = jax.nn.sigmoid(g[:, 0:H])
        f = jax.nn.sigmoid(g[:, H:2 * H])
        gg = jnp.tanh(g[:, 2 * H:3 * H])
        o = jax.nn.sigmoid(g[:, 3 * H:4 * H])
        c = f * c + i * gg
        h = o * jnp.tanh(c)
        return (h, c), h

    h0 = jnp.zeros((B, H), jnp.float32)
    c0 = jnp.zeros((B, H), jnp.float32)
    _, hs = jax.lax.scan(step, (h0, c0), jnp.swapaxes(x, 0, 1))  # (T, B, H)
    h_last = hs[lengths - 1, jnp.arange(B)]                      # (B, H)
    return h_last @ params["wlin_row"].T + params["blin"]


def make_params(key, vocab_size, embedding_dim, hidden_dim):
    ks = jax.random.split(key, 7)
    scale = 0.1
    emb = scale * jax.random.normal(ks[0], (vocab_size, embedding_dim), jnp.float32)
    emb = emb.at[0].set(0.0)                                    # padding_idx=0
    w_ih = scale * jax.random.normal(ks[1], (4 * hidden_dim, embedding_dim), jnp.float32)
    w_hh = scale * jax.random.normal(ks[2], (4 * hidden_dim, hidden_dim), jnp.float32)
    b_ih = scale * jax.random.normal(ks[3], (4 * hidden_dim,), jnp.float32)
    b_hh = scale * jax.random.normal(ks[4], (4 * hidden_dim,), jnp.float32)
    w_lin = scale * jax.random.normal(ks[5], (1, hidden_dim), jnp.float32)
    b_lin = scale * jax.random.normal(ks[6], (1,), jnp.float32)
    return {
        "emb": emb,
        "wih_t": w_ih.T,                               # (E, 4H)
        "whh_t": w_hh.T,                               # (H, 4H)
        "bias": (b_ih + b_hh).reshape(1, 4 * hidden_dim),
        "wlin_row": w_lin,                             # (1, H)
        "blin": b_lin.reshape(1, 1),
    }


if __name__ == "__main__":
    B, T = 4, 8
    vocab_size, embedding_dim, hidden_dim = 16, 32, 32

    key = jax.random.PRNGKey(0)
    k_par, k_tok, k_len = jax.random.split(key, 3)

    params = make_params(k_par, vocab_size, embedding_dim, hidden_dim)

    lengths = jax.random.randint(k_len, (B,), minval=1, maxval=T + 1, dtype=jnp.int32)
    tokens = jax.random.randint(k_tok, (B, T), minval=1, maxval=vocab_size, dtype=jnp.int32)
    # zero out padding positions (t >= length), consistent with padded batches
    pos = jnp.arange(T)[None, :]
    tokens = jnp.where(pos < lengths[:, None], tokens, 0)

    ref = reference_forward(tokens, lengths, params)

    # f32 MXU path (strict check vs PyTorch-equivalent f32 reference)
    out_f32 = lstm_variable_input_forward(tokens, lengths, params,
                                          matmul_dtype=jnp.float32)
    out_f32 = jax.block_until_ready(out_f32)
    np.testing.assert_allclose(np.asarray(out_f32), np.asarray(ref),
                               rtol=1e-5, atol=1e-5)

    # bf16 MXU path (v6e/v7x-native matmul dtype; state stays f32) — loose check
    out_bf16 = lstm_variable_input_forward(tokens, lengths, params,
                                           matmul_dtype=jnp.bfloat16)
    out_bf16 = jax.block_until_ready(out_bf16)
    np.testing.assert_allclose(np.asarray(out_bf16), np.asarray(ref),
                               rtol=1e-1, atol=3e-2)

    print("KERNEL_OK")
</pallas_src>

<mosaic_0001>
module attributes {stable_mosaic.version = 11 : i64} {
  func.func @lstm_kernel(%arg0: memref<64x32xf32, #tpu.memory_space<vmem>>, %arg1: memref<8x1xi32, #tpu.memory_space<vmem>>, %arg2: memref<32x128xf32, #tpu.memory_space<vmem>>, %arg3: memref<32x128xf32, #tpu.memory_space<vmem>>, %arg4: memref<1x128xf32, #tpu.memory_space<vmem>>, %arg5: memref<1x32xf32, #tpu.memory_space<vmem>>, %arg6: memref<1x1xf32, #tpu.memory_space<vmem>>, %arg7: memref<8x1xf32, #tpu.memory_space<vmem>>, %arg8: memref<64x128xf32, #tpu.memory_space<vmem>>, %arg9: memref<8x32xf32, #tpu.memory_space<vmem>>, %arg10: memref<8x32xf32, #tpu.memory_space<vmem>>, %arg11: memref<8x32xf32, #tpu.memory_space<vmem>>) attributes {dimension_semantics = [], scalar_prefetch = 0 : i64, scratch_operands = 4 : i64, tpu.core_type = #tpu.core_type<tc>} {
    %c0 = arith.constant 0 : index
    %c0_0 = arith.constant 0 : index
    %0 = vector.load %arg0[%c0, %c0_0] : memref<64x32xf32, #tpu.memory_space<vmem>>, vector<64x32xf32>
    %c0_1 = arith.constant 0 : index
    %c0_2 = arith.constant 0 : index
    %1 = vector.load %arg2[%c0_1, %c0_2] : memref<32x128xf32, #tpu.memory_space<vmem>>, vector<32x128xf32>
    %cst = arith.constant dense<0.000000e+00> : vector<64x128xf32>
    %2 = tpu.matmul %0, %1, %cst {dimension_numbers = #tpu.dot_dimension_numbers<[1], [0], [0], [1], [0, 0, 1, 1], [], []>} : vector<64x32xf32>, vector<32x128xf32>, vector<64x128xf32> -> vector<64x128xf32>
    %c0_3 = arith.constant 0 : index
    %c0_4 = arith.constant 0 : index
    %3 = vector.load %arg4[%c0_3, %c0_4] : memref<1x128xf32, #tpu.memory_space<vmem>>, vector<1x128xf32>
    %4 = vector.broadcast %3 : vector<1x128xf32> to vector<64x128xf32>
    %5 = arith.addf %2, %4 : vector<64x128xf32>
    %c0_5 = arith.constant 0 : index
    %c0_6 = arith.constant 0 : index
    %6 = vector.load %arg8[%c0_5, %c0_6] : memref<64x128xf32, #tpu.memory_space<vmem>>, vector<64x128xf32>
    tpu.vector_store %arg8[%c0_5, %c0_6], %5 {strides = array<i32>} : memref<64x128xf32, #tpu.memory_space<vmem>>, vector<64x128xf32>,
    %cst_7 = arith.constant 0.000000e+00 : f32
    %7 = vector.broadcast %cst_7 : f32 to vector<8x32xf32>
    %c0_8 = arith.constant 0 : index
    %c0_9 = arith.constant 0 : index
    %8 = vector.load %arg9[%c0_8, %c0_9] : memref<8x32xf32, #tpu.memory_space<vmem>>, vector<8x32xf32>
    tpu.vector_store %arg9[%c0_8, %c0_9], %7 {strides = array<i32>} : memref<8x32xf32, #tpu.memory_space<vmem>>, vector<8x32xf32>,
    %cst_10 = arith.constant 0.000000e+00 : f32
    %9 = vector.broadcast %cst_10 : f32 to vector<8x32xf32>
    %c0_11 = arith.constant 0 : index
    %c0_12 = arith.constant 0 : index
    %10 = vector.load %arg10[%c0_11, %c0_12] : memref<8x32xf32, #tpu.memory_space<vmem>>, vector<8x32xf32>
    tpu.vector_store %arg10[%c0_11, %c0_12], %9 {strides = array<i32>} : memref<8x32xf32, #tpu.memory_space<vmem>>, vector<8x32xf32>,
    %cst_13 = arith.constant 0.000000e+00 : f32
    %11 = vector.broadcast %cst_13 : f32 to vector<8x32xf32>
    %c0_14 = arith.constant 0 : index
    %c0_15 = arith.constant 0 : index
    %12 = vector.load %arg11[%c0_14, %c0_15] : memref<8x32xf32, #tpu.memory_space<vmem>>, vector<8x32xf32>
    tpu.vector_store %arg11[%c0_14, %c0_15], %11 {strides = array<i32>} : memref<8x32xf32, #tpu.memory_space<vmem>>, vector<8x32xf32>,
    %c0_16 = arith.constant 0 : index
    %c0_17 = arith.constant 0 : index
    %13 = vector.load %arg3[%c0_16, %c0_17] : memref<32x128xf32, #tpu.memory_space<vmem>>, vector<32x128xf32>
    %c0_18 = arith.constant 0 : index
    %c0_19 = arith.constant 0 : index
    %14 = vector.load %arg1[%c0_18, %c0_19] : memref<8x1xi32, #tpu.memory_space<vmem>>, vector<8x1xi32>
    %c1_i32 = arith.constant 1 : i32
    %15 = vector.broadcast %c1_i32 : i32 to vector<8x1xi32>
    %16 = arith.subi %14, %15 : vector<8x1xi32>
    %c0_i32 = arith.constant 0 : i32
    %c8_i32 = arith.constant 8 : i32
    %17 = arith.muli %c0_i32, %c8_i32 : i32
    %18 = tpu.assume_multiple %17, 8 : i32
    %19 = arith.index_cast %18 : i32 to index
    %c0_20 = arith.constant 0 : index
    %20 = vector.load %arg8[%19, %c0_20] : memref<64x128xf32, #tpu.memory_space<vmem>>, vector<8x128xf32>
    %c0_21 = arith.constant 0 : index
    %c0_22 = arith.constant 0 : index
    %21 = vector.load %arg9[%c0_21, %c0_22] : memref<8x32xf32, #tpu.memory_space<vmem>>, vector<8x32xf32>
    %cst_23 = arith.constant dense<0.000000e+00> : vector<8x128xf32>
    %22 = tpu.matmul %21, %13, %cst_23 {dimension_numbers = #tpu.dot_dimension_numbers<[1], [0], [0], [1], [0, 0, 1, 1], [], []>} : vector<8x32xf32>, vector<32x128xf32>, vector<8x128xf32> -> vector<8x128xf32>
    %23 = arith.addf %20, %22 : vector<8x128xf32>
    %24 = arith.negf %23 : vector<8x128xf32>
    %25 = math.exp %24 : vector<8x128xf32>
    %cst_24 = arith.constant 1.000000e+00 : f32
    %26 = vector.broadcast %cst_24 : f32 to vector<8x128xf32>
    %27 = arith.addf %26, %25 : vector<8x128xf32>
    %28 = arith.divf %26, %27 : vector<8x128xf32>
    %29 = math.tanh %23 : vector<8x128xf32>
    %30 = vector.extract_strided_slice %28 {offsets = [0, 0], sizes = [8, 32], strides = [1, 1]} : vector<8x128xf32> to vector<8x32xf32>
    %31 = vector.extract_strided_slice %28 {offsets = [0, 32], sizes = [8, 32], strides = [1, 1]} : vector<8x128xf32> to vector<8x32xf32>
    %32 = vector.extract_strided_slice %29 {offsets = [0, 64], sizes = [8, 32], strides = [1, 1]} : vector<8x128xf32> to vector<8x32xf32>
    %33 = vector.extract_strided_slice %28 {offsets = [0, 96], sizes = [8, 32], strides = [1, 1]} : vector<8x128xf32> to vector<8x32xf32>
    %c0_25 = arith.constant 0 : index
    %c0_26 = arith.constant 0 : index
    %34 = vector.load %arg10[%c0_25, %c0_26] : memref<8x32xf32, #tpu.memory_space<vmem>>, vector<8x32xf32>
    %35 = arith.mulf %31, %34 : vector<8x32xf32>
    %36 = arith.mulf %30, %32 : vector<8x32xf32>
    %37 = arith.addf %35, %36 : vector<8x32xf32>
    %38 = math.tanh %37 : vector<8x32xf32>
    %39 = arith.mulf %33, %38 : vector<8x32xf32>
    %c0_27 = arith.constant 0 : index
    %c0_28 = arith.constant 0 : index
    %40 = vector.load %arg10[%c0_27, %c0_28] : memref<8x32xf32, #tpu.memory_space<vmem>>, vector<8x32xf32>
    tpu.vector_store %arg10[%c0_27, %c0_28], %37 {strides = array<i32>} : memref<8x32xf32, #tpu.memory_space<vmem>>, vector<8x32xf32>,
    %c0_29 = arith.constant 0 : index
    %c0_30 = arith.constant 0 : index
    %41 = vector.load %arg9[%c0_29, %c0_30] : memref<8x32xf32, #tpu.memory_space<vmem>>, vector<8x32xf32>
    tpu.vector_store %arg9[%c0_29, %c0_30], %39 {strides = array<i32>} : memref<8x32xf32, #tpu.memory_space<vmem>>, vector<8x32xf32>,
    %42 = vector.broadcast %c0_i32 : i32 to vector<8x1xi32>
    %43 = arith.cmpi eq, %16, %42 : vector<8x1xi32>
    %c0_31 = arith.constant 0 : index
    %c0_32 = arith.constant 0 : index
    %44 = vector.load %arg11[%c0_31, %c0_32] : memref<8x32xf32, #tpu.memory_space<vmem>>, vector<8x32xf32>
    %45 = vector.shape_cast %43 : vector<8x1xi1> to vector<8x1xi1>
    %46 = vector.broadcast %45 : vector<8x1xi1> to vector<8x32xi1>
    %47 = arith.select %46, %39, %44 : vector<8x32xi1>, vector<8x32xf32>
    %c0_33 = arith.constant 0 : index
    %c0_34 = arith.constant 0 : index
    %48 = vector.load %arg11[%c0_33, %c0_34] : memref<8x32xf32, #tpu.memory_space<vmem>>, vector<8x32xf32>
    tpu.vector_store %arg11[%c0_33, %c0_34], %47 {strides = array<i32>} : memref<8x32xf32, #tpu.memory_space<vmem>>, vector<8x32xf32>,
    %c1_i32_35 = arith.constant 1 : i32
    %c8_i32_36 = arith.constant 8 : i32
    %49 = arith.muli %c1_i32_35, %c8_i32_36 : i32
    %50 = tpu.assume_multiple %49, 8 : i32
    %51 = arith.index_cast %50 : i32 to index
    %c0_37 = arith.constant 0 : index
    %52 = vector.load %arg8[%51, %c0_37] : memref<64x128xf32, #tpu.memory_space<vmem>>, vector<8x128xf32>
    %c0_38 = arith.constant 0 : index
    %c0_39 = arith.constant 0 : index
    %53 = vector.load %arg9[%c0_38, %c0_39] : memref<8x32xf32, #tpu.memory_space<vmem>>, vector<8x32xf32>
    %cst_40 = arith.constant dense<0.000000e+00> : vector<8x128xf32>
    %54 = tpu.matmul %53, %13, %cst_40 {dimension_numbers = #tpu.dot_dimension_numbers<[1], [0], [0], [1], [0, 0, 1, 1], [], []>} : vector<8x32xf32>, vector<32x128xf32>, vector<8x128xf32> -> vector<8x128xf32>
    %55 = arith.addf %52, %54 : vector<8x128xf32>
    %56 = arith.negf %55 : vector<8x128xf32>
    %57 = math.exp %56 : vector<8x128xf32>
    %cst_41 = arith.constant 1.000000e+00 : f32
    %58 = vector.broadcast %cst_41 : f32 to vector<8x128xf32>
    %59 = arith.addf %58, %57 : vector<8x128xf32>
    %60 = arith.divf %58, %59 : vector<8x128xf32>
    %61 = math.tanh %55 : vector<8x128xf32>
    %62 = vector.extract_strided_slice %60 {offsets = [0, 0], sizes = [8, 32], strides = [1, 1]} : vector<8x128xf32> to vector<8x32xf32>
    %63 = vector.extract_strided_slice %60 {offsets = [0, 32], sizes = [8, 32], strides = [1, 1]} : vector<8x128xf32> to vector<8x32xf32>
    %64 = vector.extract_strided_slice %61 {offsets = [0, 64], sizes = [8, 32], strides = [1, 1]} : vector<8x128xf32> to vector<8x32xf32>
    %65 = vector.extract_strided_slice %60 {offsets = [0, 96], sizes = [8, 32], strides = [1, 1]} : vector<8x128xf32> to vector<8x32xf32>
    %c0_42 = arith.constant 0 : index
    %c0_43 = arith.constant 0 : index
    %66 = vector.load %arg10[%c0_42, %c0_43] : memref<8x32xf32, #tpu.memory_space<vmem>>, vector<8x32xf32>
    %67 = arith.mulf %63, %66 : vector<8x32xf32>
    %68 = arith.mulf %62, %64 : vector<8x32xf32>
    %69 = arith.addf %67, %68 : vector<8x32xf32>
    %70 = math.tanh %69 : vector<8x32xf32>
    %71 = arith.mulf %65, %70 : vector<8x32xf32>
    %c0_44 = arith.constant 0 : index
    %c0_45 = arith.constant 0 : index
    %72 = vector.load %arg10[%c0_44, %c0_45] : memref<8x32xf32, #tpu.memory_space<vmem>>, vector<8x32xf32>
    tpu.vector_store %arg10[%c0_44, %c0_45], %69 {strides = array<i32>} : memref<8x32xf32, #tpu.memory_space<vmem>>, vector<8x32xf32>,
    %c0_46 = arith.constant 0 : index
    %c0_47 = arith.constant 0 : index
    %73 = vector.load %arg9[%c0_46, %c0_47] : memref<8x32xf32, #tpu.memory_space<vmem>>, vector<8x32xf32>
    tpu.vector_store %arg9[%c0_46, %c0_47], %71 {strides = array<i32>} : memref<8x32xf32, #tpu.memory_space<vmem>>, vector<8x32xf32>,
    %74 = vector.broadcast %c1_i32_35 : i32 to vector<8x1xi32>
    %75 = arith.cmpi eq, %16, %74 : vector<8x1xi32>
    %c0_48 = arith.constant 0 : index
    %c0_49 = arith.constant 0 : index
    %76 = vector.load %arg11[%c0_48, %c0_49] : memref<8x32xf32, #tpu.memory_space<vmem>>, vector<8x32xf32>
    %77 = vector.shape_cast %75 : vector<8x1xi1> to vector<8x1xi1>
    %78 = vector.broadcast %77 : vector<8x1xi1> to vector<8x32xi1>
    %79 = arith.select %78, %71, %76 : vector<8x32xi1>, vector<8x32xf32>
    %c0_50 = arith.constant 0 : index
    %c0_51 = arith.constant 0 : index
    %80 = vector.load %arg11[%c0_50, %c0_51] : memref<8x32xf32, #tpu.memory_space<vmem>>, vector<8x32xf32>
    tpu.vector_store %arg11[%c0_50, %c0_51], %79 {strides = array<i32>} : memref<8x32xf32, #tpu.memory_space<vmem>>, vector<8x32xf32>,
    %c2_i32 = arith.constant 2 : i32
    %c8_i32_52 = arith.constant 8 : i32
    %81 = arith.muli %c2_i32, %c8_i32_52 : i32
    %82 = tpu.assume_multiple %81, 8 : i32
    %83 = arith.index_cast %82 : i32 to index
    %c0_53 = arith.constant 0 : index
    %84 = vector.load %arg8[%83, %c0_53] : memref<64x128xf32, #tpu.memory_space<vmem>>, vector<8x128xf32>
    %c0_54 = arith.constant 0 : index
    %c0_55 = arith.constant 0 : index
    %85 = vector.load %arg9[%c0_54, %c0_55] : memref<8x32xf32, #tpu.memory_space<vmem>>, vector<8x32xf32>
    %cst_56 = arith.constant dense<0.000000e+00> : vector<8x128xf32>
    %86 = tpu.matmul %85, %13, %cst_56 {dimension_numbers = #tpu.dot_dimension_numbers<[1], [0], [0], [1], [0, 0, 1, 1], [], []>} : vector<8x32xf32>, vector<32x128xf32>, vector<8x128xf32> -> vector<8x128xf32>
    %87 = arith.addf %84, %86 : vector<8x128xf32>
    %88 = arith.negf %87 : vector<8x128xf32>
    %89 = math.exp %88 : vector<8x128xf32>
    %cst_57 = arith.constant 1.000000e+00 : f32
    %90 = vector.broadcast %cst_57 : f32 to vector<8x128xf32>
    %91 = arith.addf %90, %89 : vector<8x128xf32>
    %92 = arith.divf %90, %91 : vector<8x128xf32>
    %93 = math.tanh %87 : vector<8x128xf32>
    %94 = vector.extract_strided_slice %92 {offsets = [0, 0], sizes = [8, 32], strides = [1, 1]} : vector<8x128xf32> to vector<8x32xf32>
    %95 = vector.extract_strided_slice %92 {offsets = [0, 32], sizes = [8, 32], strides = [1, 1]} : vector<8x128xf32> to vector<8x32xf32>
    %96 = vector.extract_strided_slice %93 {offsets = [0, 64], sizes = [8, 32], strides = [1, 1]} : vector<8x128xf32> to vector<8x32xf32>
    %97 = vector.extract_strided_slice %92 {offsets = [0, 96], sizes = [8, 32], strides = [1, 1]} : vector<8x128xf32> to vector<8x32xf32>
    %c0_58 = arith.constant 0 : index
    %c0_59 = arith.constant 0 : index
    %98 = vector.load %arg10[%c0_58, %c0_59] : memref<8x32xf32, #tpu.memory_space<vmem>>, vector<8x32xf32>
    %99 = arith.mulf %95, %98 : vector<8x32xf32>
    %100 = arith.mulf %94, %96 : vector<8x32xf32>
    %101 = arith.addf %99, %100 : vector<8x32xf32>
    %102 = math.tanh %101 : vector<8x32xf32>
    %103 = arith.mulf %97, %102 : vector<8x32xf32>
    %c0_60 = arith.constant 0 : index
    %c0_61 = arith.constant 0 : index
    %104 = vector.load %arg10[%c0_60, %c0_61] : memref<8x32xf32, #tpu.memory_space<vmem>>, vector<8x32xf32>
    tpu.vector_store %arg10[%c0_60, %c0_61], %101 {strides = array<i32>} : memref<8x32xf32, #tpu.memory_space<vmem>>, vector<8x32xf32>,
    %c0_62 = arith.constant 0 : index
    %c0_63 = arith.constant 0 : index
    %105 = vector.load %arg9[%c0_62, %c0_63] : memref<8x32xf32, #tpu.memory_space<vmem>>, vector<8x32xf32>
    tpu.vector_store %arg9[%c0_62, %c0_63], %103 {strides = array<i32>} : memref<8x32xf32, #tpu.memory_space<vmem>>, vector<8x32xf32>,
    %106 = vector.broadcast %c2_i32 : i32 to vector<8x1xi32>
    %107 = arith.cmpi eq, %16, %106 : vector<8x1xi32>
    %c0_64 = arith.constant 0 : index
    %c0_65 = arith.constant 0 : index
    %108 = vector.load %arg11[%c0_64, %c0_65] : memref<8x32xf32, #tpu.memory_space<vmem>>, vector<8x32xf32>
    %109 = vector.shape_cast %107 : vector<8x1xi1> to vector<8x1xi1>
    %110 = vector.broadcast %109 : vector<8x1xi1> to vector<8x32xi1>
    %111 = arith.select %110, %103, %108 : vector<8x32xi1>, vector<8x32xf32>
    %c0_66 = arith.constant 0 : index
    %c0_67 = arith.constant 0 : index
    %112 = vector.load %arg11[%c0_66, %c0_67] : memref<8x32xf32, #tpu.memory_space<vmem>>, vector<8x32xf32>
    tpu.vector_store %arg11[%c0_66, %c0_67], %111 {strides = array<i32>} : memref<8x32xf32, #tpu.memory_space<vmem>>, vector<8x32xf32>,
    %c3_i32 = arith.constant 3 : i32
    %c8_i32_68 = arith.constant 8 : i32
    %113 = arith.muli %c3_i32, %c8_i32_68 : i32
    %114 = tpu.assume_multiple %113, 8 : i32
    %115 = arith.index_cast %114 : i32 to index
    %c0_69 = arith.constant 0 : index
    %116 = vector.load %arg8[%115, %c0_69] : memref<64x128xf32, #tpu.memory_space<vmem>>, vector<8x128xf32>
    %c0_70 = arith.constant 0 : index
    %c0_71 = arith.constant 0 : index
    %117 = vector.load %arg9[%c0_70, %c0_71] : memref<8x32xf32, #tpu.memory_space<vmem>>, vector<8x32xf32>
    %cst_72 = arith.constant dense<0.000000e+00> : vector<8x128xf32>
    %118 = tpu.matmul %117, %13, %cst_72 {dimension_numbers = #tpu.dot_dimension_numbers<[1], [0], [0], [1], [0, 0, 1, 1], [], []>} : vector<8x32xf32>, vector<32x128xf32>, vector<8x128xf32> -> vector<8x128xf32>
    %119 = arith.addf %116, %118 : vector<8x128xf32>
    %120 = arith.negf %119 : vector<8x128xf32>
    %121 = math.exp %120 : vector<8x128xf32>
    %cst_73 = arith.constant 1.000000e+00 : f32
    %122 = vector.broadcast %cst_73 : f32 to vector<8x128xf32>
    %123 = arith.addf %122, %121 : vector<8x128xf32>
    %124 = arith.divf %122, %123 : vector<8x128xf32>
    %125 = math.tanh %119 : vector<8x128xf32>
    %126 = vector.extract_strided_slice %124 {offsets = [0, 0], sizes = [8, 32], strides = [1, 1]} : vector<8x128xf32> to vector<8x32xf32>
    %127 = vector.extract_strided_slice %124 {offsets = [0, 32], sizes = [8, 32], strides = [1, 1]} : vector<8x128xf32> to vector<8x32xf32>
    %128 = vector.extract_strided_slice %125 {offsets = [0, 64], sizes = [8, 32], strides = [1, 1]} : vector<8x128xf32> to vector<8x32xf32>
    %129 = vector.extract_strided_slice %124 {offsets = [0, 96], sizes = [8, 32], strides = [1, 1]} : vector<8x128xf32> to vector<8x32xf32>
    %c0_74 = arith.constant 0 : index
    %c0_75 = arith.constant 0 : index
    %130 = vector.load %arg10[%c0_74, %c0_75] : memref<8x32xf32, #tpu.memory_space<vmem>>, vector<8x32xf32>
    %131 = arith.mulf %127, %130 : vector<8x32xf32>
    %132 = arith.mulf %126, %128 : vector<8x32xf32>
    %133 = arith.addf %131, %132 : vector<8x32xf32>
    %134 = math.tanh %133 : vector<8x32xf32>
    %135 = arith.mulf %129, %134 : vector<8x32xf32>
    %c0_76 = arith.constant 0 : index
    %c0_77 = arith.constant 0 : index
    %136 = vector.load %arg10[%c0_76, %c0_77] : memref<8x32xf32, #tpu.memory_space<vmem>>, vector<8x32xf32>
    tpu.vector_store %arg10[%c0_76, %c0_77], %133 {strides = array<i32>} : memref<8x32xf32, #tpu.memory_space<vmem>>, vector<8x32xf32>,
    %c0_78 = arith.constant 0 : index
    %c0_79 = arith.constant 0 : index
    %137 = vector.load %arg9[%c0_78, %c0_79] : memref<8x32xf32, #tpu.memory_space<vmem>>, vector<8x32xf32>
    tpu.vector_store %arg9[%c0_78, %c0_79], %135 {strides = array<i32>} : memref<8x32xf32, #tpu.memory_space<vmem>>, vector<8x32xf32>,
    %138 = vector.broadcast %c3_i32 : i32 to vector<8x1xi32>
    %139 = arith.cmpi eq, %16, %138 : vector<8x1xi32>
    %c0_80 = arith.constant 0 : index
    %c0_81 = arith.constant 0 : index
    %140 = vector.load %arg11[%c0_80, %c0_81] : memref<8x32xf32, #tpu.memory_space<vmem>>, vector<8x32xf32>
    %141 = vector.shape_cast %139 : vector<8x1xi1> to vector<8x1xi1>
    %142 = vector.broadcast %141 : vector<8x1xi1> to vector<8x32xi1>
    %143 = arith.select %142, %135, %140 : vector<8x32xi1>, vector<8x32xf32>
    %c0_82 = arith.constant 0 : index
    %c0_83 = arith.constant 0 : index
    %144 = vector.load %arg11[%c0_82, %c0_83] : memref<8x32xf32, #tpu.memory_space<vmem>>, vector<8x32xf32>
    tpu.vector_store %arg11[%c0_82, %c0_83], %143 {strides = array<i32>} : memref<8x32xf32, #tpu.memory_space<vmem>>, vector<8x32xf32>,
    %c4_i32 = arith.constant 4 : i32
    %c8_i32_84 = arith.constant 8 : i32
    %145 = arith.muli %c4_i32, %c8_i32_84 : i32
    %146 = tpu.assume_multiple %145, 8 : i32
    %147 = arith.index_cast %146 : i32 to index
    %c0_85 = arith.constant 0 : index
    %148 = vector.load %arg8[%147, %c0_85] : memref<64x128xf32, #tpu.memory_space<vmem>>, vector<8x128xf32>
    %c0_86 = arith.constant 0 : index
    %c0_87 = arith.constant 0 : index
    %149 = vector.load %arg9[%c0_86, %c0_87] : memref<8x32xf32, #tpu.memory_space<vmem>>, vector<8x32xf32>
    %cst_88 = arith.constant dense<0.000000e+00> : vector<8x128xf32>
    %150 = tpu.matmul %149, %13, %cst_88 {dimension_numbers = #tpu.dot_dimension_numbers<[1], [0], [0], [1], [0, 0, 1, 1], [], []>} : vector<8x32xf32>, vector<32x128xf32>, vector<8x128xf32> -> vector<8x128xf32>
    %151 = arith.addf %148, %150 : vector<8x128xf32>
    %152 = arith.negf %151 : vector<8x128xf32>
    %153 = math.exp %152 : vector<8x128xf32>
    %cst_89 = arith.constant 1.000000e+00 : f32
    %154 = vector.broadcast %cst_89 : f32 to vector<8x128xf32>
    %155 = arith.addf %154, %153 : vector<8x128xf32>
    %156 = arith.divf %154, %155 : vector<8x128xf32>
    %157 = math.tanh %151 : vector<8x128xf32>
    %158 = vector.extract_strided_slice %156 {offsets = [0, 0], sizes = [8, 32], strides = [1, 1]} : vector<8x128xf32> to vector<8x32xf32>
    %159 = vector.extract_strided_slice %156 {offsets = [0, 32], sizes = [8, 32], strides = [1, 1]} : vector<8x128xf32> to vector<8x32xf32>
    %160 = vector.extract_strided_slice %157 {offsets = [0, 64], sizes = [8, 32], strides = [1, 1]} : vector<8x128xf32> to vector<8x32xf32>
    %161 = vector.extract_strided_slice %156 {offsets = [0, 96], sizes = [8, 32], strides = [1, 1]} : vector<8x128xf32> to vector<8x32xf32>
    %c0_90 = arith.constant 0 : index
    %c0_91 = arith.constant 0 : index
    %162 = vector.load %arg10[%c0_90, %c0_91] : memref<8x32xf32, #tpu.memory_space<vmem>>, vector<8x32xf32>
    %163 = arith.mulf %159, %162 : vector<8x32xf32>
    %164 = arith.mulf %158, %160 : vector<8x32xf32>
    %165 = arith.addf %163, %164 : vector<8x32xf32>
    %166 = math.tanh %165 : vector<8x32xf32>
    %167 = arith.mulf %161, %166 : vector<8x32xf32>
    %c0_92 = arith.constant 0 : index
    %c0_93 = arith.constant 0 : index
    %168 = vector.load %arg10[%c0_92, %c0_93] : memref<8x32xf32, #tpu.memory_space<vmem>>, vector<8x32xf32>
    tpu.vector_store %arg10[%c0_92, %c0_93], %165 {strides = array<i32>} : memref<8x32xf32, #tpu.memory_space<vmem>>, vector<8x32xf32>,
    %c0_94 = arith.constant 0 : index
    %c0_95 = arith.constant 0 : index
    %169 = vector.load %arg9[%c0_94, %c0_95] : memref<8x32xf32, #tpu.memory_space<vmem>>, vector<8x32xf32>
    tpu.vector_store %arg9[%c0_94, %c0_95], %167 {strides = array<i32>} : memref<8x32xf32, #tpu.memory_space<vmem>>, vector<8x32xf32>,
    %170 = vector.broadcast %c4_i32 : i32 to vector<8x1xi32>
    %171 = arith.cmpi eq, %16, %170 : vector<8x1xi32>
    %c0_96 = arith.constant 0 : index
    %c0_97 = arith.constant 0 : index
    %172 = vector.load %arg11[%c0_96, %c0_97] : memref<8x32xf32, #tpu.memory_space<vmem>>, vector<8x32xf32>
    %173 = vector.shape_cast %171 : vector<8x1xi1> to vector<8x1xi1>
    %174 = vector.broadcast %173 : vector<8x1xi1> to vector<8x32xi1>
    %175 = arith.select %174, %167, %172 : vector<8x32xi1>, vector<8x32xf32>
    %c0_98 = arith.constant 0 : index
    %c0_99 = arith.constant 0 : index
    %176 = vector.load %arg11[%c0_98, %c0_99] : memref<8x32xf32, #tpu.memory_space<vmem>>, vector<8x32xf32>
    tpu.vector_store %arg11[%c0_98, %c0_99], %175 {strides = array<i32>} : memref<8x32xf32, #tpu.memory_space<vmem>>, vector<8x32xf32>,
    %c5_i32 = arith.constant 5 : i32
    %c8_i32_100 = arith.constant 8 : i32
    %177 = arith.muli %c5_i32, %c8_i32_100 : i32
    %178 = tpu.assume_multiple %177, 8 : i32
    %179 = arith.index_cast %178 : i32 to index
    %c0_101 = arith.constant 0 : index
    %180 = vector.load %arg8[%179, %c0_101] : memref<64x128xf32, #tpu.memory_space<vmem>>, vector<8x128xf32>
    %c0_102 = arith.constant 0 : index
    %c0_103 = arith.constant 0 : index
    %181 = vector.load %arg9[%c0_102, %c0_103] : memref<8x32xf32, #tpu.memory_space<vmem>>, vector<8x32xf32>
    %cst_104 = arith.constant dense<0.000000e+00> : vector<8x128xf32>
    %182 = tpu.matmul %181, %13, %cst_104 {dimension_numbers = #tpu.dot_dimension_numbers<[1], [0], [0], [1], [0, 0, 1, 1], [], []>} : vector<8x32xf32>, vector<32x128xf32>, vector<8x128xf32> -> vector<8x128xf32>
    %183 = arith.addf %180, %182 : vector<8x128xf32>
    %184 = arith.negf %183 : vector<8x128xf32>
    %185 = math.exp %184 : vector<8x128xf32>
    %cst_105 = arith.constant 1.000000e+00 : f32
    %186 = vector.broadcast %cst_105 : f32 to vector<8x128xf32>
    %187 = arith.addf %186, %185 : vector<8x128xf32>
    %188 = arith.divf %186, %187 : vector<8x128xf32>
    %189 = math.tanh %183 : vector<8x128xf32>
    %190 = vector.extract_strided_slice %188 {offsets = [0, 0], sizes = [8, 32], strides = [1, 1]} : vector<8x128xf32> to vector<8x32xf32>
    %191 = vector.extract_strided_slice %188 {offsets = [0, 32], sizes = [8, 32], strides = [1, 1]} : vector<8x128xf32> to vector<8x32xf32>
    %192 = vector.extract_strided_slice %189 {offsets = [0, 64], sizes = [8, 32], strides = [1, 1]} : vector<8x128xf32> to vector<8x32xf32>
    %193 = vector.extract_strided_slice %188 {offsets = [0, 96], sizes = [8, 32], strides = [1, 1]} : vector<8x128xf32> to vector<8x32xf32>
    %c0_106 = arith.constant 0 : index
    %c0_107 = arith.constant 0 : index
    %194 = vector.load %arg10[%c0_106, %c0_107] : memref<8x32xf32, #tpu.memory_space<vmem>>, vector<8x32xf32>
    %195 = arith.mulf %191, %194 : vector<8x32xf32>
    %196 = arith.mulf %190, %192 : vector<8x32xf32>
    %197 = arith.addf %195, %196 : vector<8x32xf32>
    %198 = math.tanh %197 : vector<8x32xf32>
    %199 = arith.mulf %193, %198 : vector<8x32xf32>
    %c0_108 = arith.constant 0 : index
    %c0_109 = arith.constant 0 : index
    %200 = vector.load %arg10[%c0_108, %c0_109] : memref<8x32xf32, #tpu.memory_space<vmem>>, vector<8x32xf32>
    tpu.vector_store %arg10[%c0_108, %c0_109], %197 {strides = array<i32>} : memref<8x32xf32, #tpu.memory_space<vmem>>, vector<8x32xf32>,
    %c0_110 = arith.constant 0 : index
    %c0_111 = arith.constant 0 : index
    %201 = vector.load %arg9[%c0_110, %c0_111] : memref<8x32xf32, #tpu.memory_space<vmem>>, vector<8x32xf32>
    tpu.vector_store %arg9[%c0_110, %c0_111], %199 {strides = array<i32>} : memref<8x32xf32, #tpu.memory_space<vmem>>, vector<8x32xf32>,
    %202 = vector.broadcast %c5_i32 : i32 to vector<8x1xi32>
    %203 = arith.cmpi eq, %16, %202 : vector<8x1xi32>
    %c0_112 = arith.constant 0 : index
    %c0_113 = arith.constant 0 : index
    %204 = vector.load %arg11[%c0_112, %c0_113] : memref<8x32xf32, #tpu.memory_space<vmem>>, vector<8x32xf32>
    %205 = vector.shape_cast %203 : vector<8x1xi1> to vector<8x1xi1>
    %206 = vector.broadcast %205 : vector<8x1xi1> to vector<8x32xi1>
    %207 = arith.select %206, %199, %204 : vector<8x32xi1>, vector<8x32xf32>
    %c0_114 = arith.constant 0 : index
    %c0_115 = arith.constant 0 : index
    %208 = vector.load %arg11[%c0_114, %c0_115] : memref<8x32xf32, #tpu.memory_space<vmem>>, vector<8x32xf32>
    tpu.vector_store %arg11[%c0_114, %c0_115], %207 {strides = array<i32>} : memref<8x32xf32, #tpu.memory_space<vmem>>, vector<8x32xf32>,
    %c6_i32 = arith.constant 6 : i32
    %c8_i32_116 = arith.constant 8 : i32
    %209 = arith.muli %c6_i32, %c8_i32_116 : i32
    %210 = tpu.assume_multiple %209, 8 : i32
    %211 = arith.index_cast %210 : i32 to index
    %c0_117 = arith.constant 0 : index
    %212 = vector.load %arg8[%211, %c0_117] : memref<64x128xf32, #tpu.memory_space<vmem>>, vector<8x128xf32>
    %c0_118 = arith.constant 0 : index
    %c0_119 = arith.constant 0 : index
    %213 = vector.load %arg9[%c0_118, %c0_119] : memref<8x32xf32, #tpu.memory_space<vmem>>, vector<8x32xf32>
    %cst_120 = arith.constant dense<0.000000e+00> : vector<8x128xf32>
    %214 = tpu.matmul %213, %13, %cst_120 {dimension_numbers = #tpu.dot_dimension_numbers<[1], [0], [0], [1], [0, 0, 1, 1], [], []>} : vector<8x32xf32>, vector<32x128xf32>, vector<8x128xf32> -> vector<8x128xf32>
    %215 = arith.addf %212, %214 : vector<8x128xf32>
    %216 = arith.negf %215 : vector<8x128xf32>
    %217 = math.exp %216 : vector<8x128xf32>
    %cst_121 = arith.constant 1.000000e+00 : f32
    %218 = vector.broadcast %cst_121 : f32 to vector<8x128xf32>
    %219 = arith.addf %218, %217 : vector<8x128xf32>
    %220 = arith.divf %218, %219 : vector<8x128xf32>
    %221 = math.tanh %215 : vector<8x128xf32>
    %222 = vector.extract_strided_slice %220 {offsets = [0, 0], sizes = [8, 32], strides = [1, 1]} : vector<8x128xf32> to vector<8x32xf32>
    %223 = vector.extract_strided_slice %220 {offsets = [0, 32], sizes = [8, 32], strides = [1, 1]} : vector<8x128xf32> to vector<8x32xf32>
    %224 = vector.extract_strided_slice %221 {offsets = [0, 64], sizes = [8, 32], strides = [1, 1]} : vector<8x128xf32> to vector<8x32xf32>
    %225 = vector.extract_strided_slice %220 {offsets = [0, 96], sizes = [8, 32], strides = [1, 1]} : vector<8x128xf32> to vector<8x32xf32>
    %c0_122 = arith.constant 0 : index
    %c0_123 = arith.constant 0 : index
    %226 = vector.load %arg10[%c0_122, %c0_123] : memref<8x32xf32, #tpu.memory_space<vmem>>, vector<8x32xf32>
    %227 = arith.mulf %223, %226 : vector<8x32xf32>
    %228 = arith.mulf %222, %224 : vector<8x32xf32>
    %229 = arith.addf %227, %228 : vector<8x32xf32>
    %230 = math.tanh %229 : vector<8x32xf32>
    %231 = arith.mulf %225, %230 : vector<8x32xf32>
    %c0_124 = arith.constant 0 : index
    %c0_125 = arith.constant 0 : index
    %232 = vector.load %arg10[%c0_124, %c0_125] : memref<8x32xf32, #tpu.memory_space<vmem>>, vector<8x32xf32>
    tpu.vector_store %arg10[%c0_124, %c0_125], %229 {strides = array<i32>} : memref<8x32xf32, #tpu.memory_space<vmem>>, vector<8x32xf32>,
    %c0_126 = arith.constant 0 : index
    %c0_127 = arith.constant 0 : index
    %233 = vector.load %arg9[%c0_126, %c0_127] : memref<8x32xf32, #tpu.memory_space<vmem>>, vector<8x32xf32>
    tpu.vector_store %arg9[%c0_126, %c0_127], %231 {strides = array<i32>} : memref<8x32xf32, #tpu.memory_space<vmem>>, vector<8x32xf32>,
    %234 = vector.broadcast %c6_i32 : i32 to vector<8x1xi32>
    %235 = arith.cmpi eq, %16, %234 : vector<8x1xi32>
    %c0_128 = arith.constant 0 : index
    %c0_129 = arith.constant 0 : index
    %236 = vector.load %arg11[%c0_128, %c0_129] : memref<8x32xf32, #tpu.memory_space<vmem>>, vector<8x32xf32>
    %237 = vector.shape_cast %235 : vector<8x1xi1> to vector<8x1xi1>
    %238 = vector.broadcast %237 : vector<8x1xi1> to vector<8x32xi1>
    %239 = arith.select %238, %231, %236 : vector<8x32xi1>, vector<8x32xf32>
    %c0_130 = arith.constant 0 : index
    %c0_131 = arith.constant 0 : index
    %240 = vector.load %arg11[%c0_130, %c0_131] : memref<8x32xf32, #tpu.memory_space<vmem>>, vector<8x32xf32>
    tpu.vector_store %arg11[%c0_130, %c0_131], %239 {strides = array<i32>} : memref<8x32xf32, #tpu.memory_space<vmem>>, vector<8x32xf32>,
    %c7_i32 = arith.constant 7 : i32
    %c8_i32_132 = arith.constant 8 : i32
    %241 = arith.muli %c7_i32, %c8_i32_132 : i32
    %242 = tpu.assume_multiple %241, 8 : i32
    %243 = arith.index_cast %242 : i32 to index
    %c0_133 = arith.constant 0 : index
    %244 = vector.load %arg8[%243, %c0_133] : memref<64x128xf32, #tpu.memory_space<vmem>>, vector<8x128xf32>
    %c0_134 = arith.constant 0 : index
    %c0_135 = arith.constant 0 : index
    %245 = vector.load %arg9[%c0_134, %c0_135] : memref<8x32xf32, #tpu.memory_space<vmem>>, vector<8x32xf32>
    %cst_136 = arith.constant dense<0.000000e+00> : vector<8x128xf32>
    %246 = tpu.matmul %245, %13, %cst_136 {dimension_numbers = #tpu.dot_dimension_numbers<[1], [0], [0], [1], [0, 0, 1, 1], [], []>} : vector<8x32xf32>, vector<32x128xf32>, vector<8x128xf32> -> vector<8x128xf32>
    %247 = arith.addf %244, %246 : vector<8x128xf32>
    %248 = arith.negf %247 : vector<8x128xf32>
    %249 = math.exp %248 : vector<8x128xf32>
    %cst_137 = arith.constant 1.000000e+00 : f32
    %250 = vector.broadcast %cst_137 : f32 to vector<8x128xf32>
    %251 = arith.addf %250, %249 : vector<8x128xf32>
    %252 = arith.divf %250, %251 : vector<8x128xf32>
    %253 = math.tanh %247 : vector<8x128xf32>
    %254 = vector.extract_strided_slice %252 {offsets = [0, 0], sizes = [8, 32], strides = [1, 1]} : vector<8x128xf32> to vector<8x32xf32>
    %255 = vector.extract_strided_slice %252 {offsets = [0, 32], sizes = [8, 32], strides = [1, 1]} : vector<8x128xf32> to vector<8x32xf32>
    %256 = vector.extract_strided_slice %253 {offsets = [0, 64], sizes = [8, 32], strides = [1, 1]} : vector<8x128xf32> to vector<8x32xf32>
    %257 = vector.extract_strided_slice %252 {offsets = [0, 96], sizes = [8, 32], strides = [1, 1]} : vector<8x128xf32> to vector<8x32xf32>
    %c0_138 = arith.constant 0 : index
    %c0_139 = arith.constant 0 : index
    %258 = vector.load %arg10[%c0_138, %c0_139] : memref<8x32xf32, #tpu.memory_space<vmem>>, vector<8x32xf32>
    %259 = arith.mulf %255, %258 : vector<8x32xf32>
    %260 = arith.mulf %254, %256 : vector<8x32xf32>
    %261 = arith.addf %259, %260 : vector<8x32xf32>
    %262 = math.tanh %261 : vector<8x32xf32>
    %263 = arith.mulf %257, %262 : vector<8x32xf32>
    %c0_140 = arith.constant 0 : index
    %c0_141 = arith.constant 0 : index
    %264 = vector.load %arg10[%c0_140, %c0_141] : memref<8x32xf32, #tpu.memory_space<vmem>>, vector<8x32xf32>
    tpu.vector_store %arg10[%c0_140, %c0_141], %261 {strides = array<i32>} : memref<8x32xf32, #tpu.memory_space<vmem>>, vector<8x32xf32>,
    %c0_142 = arith.constant 0 : index
    %c0_143 = arith.constant 0 : index
    %265 = vector.load %arg9[%c0_142, %c0_143] : memref<8x32xf32, #tpu.memory_space<vmem>>, vector<8x32xf32>
    tpu.vector_store %arg9[%c0_142, %c0_143], %263 {strides = array<i32>} : memref<8x32xf32, #tpu.memory_space<vmem>>, vector<8x32xf32>,
    %266 = vector.broadcast %c7_i32 : i32 to vector<8x1xi32>
    %267 = arith.cmpi eq, %16, %266 : vector<8x1xi32>
    %c0_144 = arith.constant 0 : index
    %c0_145 = arith.constant 0 : index
    %268 = vector.load %arg11[%c0_144, %c0_145] : memref<8x32xf32, #tpu.memory_space<vmem>>, vector<8x32xf32>
    %269 = vector.shape_cast %267 : vector<8x1xi1> to vector<8x1xi1>
    %270 = vector.broadcast %269 : vector<8x1xi1> to vector<8x32xi1>
    %271 = arith.select %270, %263, %268 : vector<8x32xi1>, vector<8x32xf32>
    %c0_146 = arith.constant 0 : index
    %c0_147 = arith.constant 0 : index
    %272 = vector.load %arg11[%c0_146, %c0_147] : memref<8x32xf32, #tpu.memory_space<vmem>>, vector<8x32xf32>
    tpu.vector_store %arg11[%c0_146, %c0_147], %271 {strides = array<i32>} : memref<8x32xf32, #tpu.memory_space<vmem>>, vector<8x32xf32>,
    %c8_i32_148 = arith.constant 8 : i32
    %c0_149 = arith.constant 0 : index
    %c0_150 = arith.constant 0 : index
    %273 = vector.load %arg11[%c0_149, %c0_150] : memref<8x32xf32, #tpu.memory_space<vmem>>, vector<8x32xf32>
    %c0_151 = arith.constant 0 : index
    %c0_152 = arith.constant 0 : index
    %274 = vector.load %arg5[%c0_151, %c0_152] : memref<1x32xf32, #tpu.memory_space<vmem>>, vector<1x32xf32>
    %275 = vector.broadcast %274 : vector<1x32xf32> to vector<8x32xf32>
    %276 = arith.mulf %273, %275 : vector<8x32xf32>
    %cst_153 = arith.constant dense<0.000000e+00> : vector<8xf32>
    %277 = vector.multi_reduction <add>, %276, %cst_153 [1] : vector<8x32xf32> to vector<8xf32>
    %278 = vector.shape_cast %277 : vector<8xf32> to vector<8x1xf32>
    %c0_154 = arith.constant 0 : index
    %c0_155 = arith.constant 0 : index
    %279 = vector.load %arg6[%c0_154, %c0_155] : memref<1x1xf32, #tpu.memory_space<vmem>>, vector<1x1xf32>
    %280 = vector.broadcast %279 : vector<1x1xf32> to vector<8x1xf32>
    %281 = arith.addf %278, %280 : vector<8x1xf32>
    %c0_156 = arith.constant 0 : index
    %c0_157 = arith.constant 0 : index
    %282 = vector.load %arg7[%c0_156, %c0_157] : memref<8x1xf32, #tpu.memory_space<vmem>>, vector<8x1xf32>
    tpu.vector_store %arg7[%c0_156, %c0_157], %281 {strides = array<i32>} : memref<8x1xf32, #tpu.memory_space<vmem>>, vector<8x1xf32>,
    return
  }
}

</mosaic_0001>

<llo_original>
// kernel: tpu_custom_call.1
$region0: #{tpu_custom_call.1}
  #allocation0 [shape = 'u32[]', space=smem, size = 0x4, offset = 0x4, fixed_abs, tag = 'smem constant byte address 0x4 - core index']
  #allocation1 [shape = 'u32[144,128]{1,0:T(1,128)}', space=vmem, size = 0x12000, scoped, tag = 'internal scratch']
  #allocation2 [shape = 'f32[64,128]{1,0:T(8,128)}', space=vmem, size = 0x8000, scoped, tag = 'scratch operand']
  #allocation3 [shape = 'f32[8,32]{1,0:T(8,128)}', space=vmem, size = 0x1000, scoped, tag = 'scratch operand']
  #allocation4 [shape = 'f32[8,32]{1,0:T(8,128)}', space=vmem, size = 0x1000, scoped, tag = 'scratch operand']
  #allocation5 [shape = 'f32[8,32]{1,0:T(8,128)}', space=vmem, size = 0x1000, scoped, tag = 'scratch operand']
  #allocation6 [shape = 'f32[1,1]{1,0:T(1,128)S(1)}', space=vmem, size = 0x200, scoped, tag = 'scoped memory for tpu_custom_call.1']
  %s0 = inlined_call_operand.vmem [shape: f32[64,32], index: 0, kind: input, shape index: {}]
  %s1 = inlined_call_operand.vmem [shape: s32[8,1], index: 1, kind: input, shape index: {}]
  %s2 = inlined_call_operand.vmem [shape: f32[32,128], index: 2, kind: input, shape index: {}]
  %s3 = inlined_call_operand.vmem [shape: f32[32,128], index: 3, kind: input, shape index: {}]
  %s4 = inlined_call_operand.vmem [shape: f32[1,128], index: 4, kind: input, shape index: {}]
  %s5 = inlined_call_operand.vmem [shape: f32[1,32], index: 5, kind: input, shape index: {}]
  %s6 = inlined_call_operand.<no memory space> [shape: f32[1,1], index: 6, kind: input, shape index: {}]
  %s7 = inlined_call_operand.vmem [shape: f32[8,1], index: 7, kind: output, shape index: {}]
  %s8 = sld [smem:[#allocation0]]
  $region38: #{tpu_custom_call.1} parent=0
    _
  %s10 = ssub.s32 1, %s8
  %s11 = scalar_select 0, %s10, %s8
  %v12 = vstv %s6
  %13 = vst [vmem:[#allocation6] sm:$0x1] %v12
  // Predicated region
  $region2: #{tpu_custom_call.1} parent=0 // pred_check
    _
  $region3: #{tpu_custom_call.1} parent=0 // pred_check_branch
    %15 = sbr.rel (0) target = $region5
  $region4: #{tpu_custom_call.1} parent=0 // pred_region
    _
  $region5: #{tpu_custom_call.1} parent=0 // pred_fallthru
    _
  // Predicated region
  $region6: #{tpu_custom_call.1} parent=0 // pred_check
    _
  $region7: #{tpu_custom_call.1} parent=0 // pred_check_branch
    %17 = sbr.rel (0) target = $region9
  $region8: #{tpu_custom_call.1} parent=0 // pred_region
    _
  $region9: #{tpu_custom_call.1} parent=0 // pred_fallthru
    _
  // Predicated region
  $region10: #{tpu_custom_call.1} parent=0 // pred_check
    _
  $region11: #{tpu_custom_call.1} parent=0 // pred_check_branch
    %19 = sbr.rel (0) target = $region13
  $region12: #{tpu_custom_call.1} parent=0 // pred_region
    _
  $region13: #{tpu_custom_call.1} parent=0 // pred_fallthru
    _
  // Predicated region
  $region14: #{tpu_custom_call.1} parent=0 // pred_check
    _
  $region15: #{tpu_custom_call.1} parent=0 // pred_check_branch
    %21 = sbr.rel (0) target = $region17
  $region16: #{tpu_custom_call.1} parent=0 // pred_region
    _
  $region17: #{tpu_custom_call.1} parent=0 // pred_fallthru
    _
  // Predicated region
  $region18: #{tpu_custom_call.1} parent=0 // pred_check
    _
  $region19: #{tpu_custom_call.1} parent=0 // pred_check_branch
    %23 = sbr.rel (0) target = $region21
  $region20: #{tpu_custom_call.1} parent=0 // pred_region
    _
  $region21: #{tpu_custom_call.1} parent=0 // pred_fallthru
    _
  // Predicated region
  $region22: #{tpu_custom_call.1} parent=0 // pred_check
    _
  $region23: #{tpu_custom_call.1} parent=0 // pred_check_branch
    %25 = sbr.rel (0) target = $region25
  $region24: #{tpu_custom_call.1} parent=0 // pred_region
    _
  $region25: #{tpu_custom_call.1} parent=0 // pred_fallthru
    _
  // Predicated region
  $region26: #{tpu_custom_call.1} parent=0 // pred_check
    _
  $region27: #{tpu_custom_call.1} parent=0 // pred_check_branch
    %27 = sbr.rel (0) target = $region29
  $region28: #{tpu_custom_call.1} parent=0 // pred_region
    _
  $region29: #{tpu_custom_call.1} parent=0 // pred_fallthru
    _
  %v28 = vld [vmem:[%s0] sm:$0xff]
  %v29 = vld [vmem:[%s0 + $0x8] sm:$0xff]
  %v30 = vld [vmem:[%s0 + $0x10] sm:$0xff]
  %v31 = vld [vmem:[%s0 + $0x18] sm:$0xff]
  %v32 = vld [vmem:[%s0 + $0x20] sm:$0xff]
  %v33 = vld [vmem:[%s0 + $0x28] sm:$0xff]
  %v34 = vld [vmem:[%s0 + $0x30] sm:$0xff]
  %v35 = vld [vmem:[%s0 + $0x38] sm:$0xff]
  %v36 = vld [vmem:[%s2] sm:$0xff]
  %v37 = vld [vmem:[%s2 + $0x8] sm:$0xff]
  %v38 = vld [vmem:[%s2 + $0x10] sm:$0xff]
  %v39 = vld [vmem:[%s2 + $0x18] sm:$0xff]
  %v40 = vld [vmem:[%s4] sm:$0x1]
  %v42 = vlaneseq
  %v43 = vshrl.u32 %v42, 7
  %v44 = vsub.s32 0, %v43
  %v45 = vrot.slane %v40, %v44
  %vm47 = vcmask 261120
  %v49 = vsel %vm47, %v28, 0
  %v52 = vsel %vm47, %v29, 0
  %v55 = vsel %vm47, %v30, 0
  %v58 = vsel %vm47, %v31, 0
  %v61 = vsel %vm47, %v32, 0
  %v64 = vsel %vm47, %v33, 0
  %v67 = vsel %vm47, %v34, 0
  %v70 = vsel %vm47, %v35, 0
  %72 = vmatprep.subr.mxu0 0.0
  %73 = vmatpush1.msra.mxu0 %v36
  %74 = vmatprep.subr.mxu0 0.0
  %75 = vmatpush1.msra.mxu0 %v37
  %76 = vmatprep.subr.mxu0 0.0
  %77 = vmatpush1.msra.mxu0 %v38
  %78 = vmatprep.subr.mxu0 0.0
  %79 = vmatpush1.msra.mxu0 %v39
  %80 = vmatprep.subr.mxu0 0.0
  %81 = vmatpush1.msra.mxu0 0.0
  %82 = vmatprep.subr.mxu0 0.0
  %83 = vmatpush1.msra.mxu0 0.0
  %84 = vmatprep.subr.mxu0 0.0
  %85 = vmatpush1.msra.mxu0 0.0
  %86 = vmatprep.subr.mxu0 0.0
  %87 = vmatpush1.msra.mxu0 0.0
  %88 = vmatprep.subr.mxu0 0.0
  %89 = vmatpush1.msra.mxu0 0.0
  %90 = vmatprep.subr.mxu0 0.0
  %91 = vmatpush1.msra.mxu0 0.0
  %92 = vmatprep.subr.mxu0 0.0
  %93 = vmatpush1.msra.mxu0 0.0
  %94 = vmatprep.subr.mxu0 0.0
  %95 = vmatpush1.msra.mxu0 0.0
  %96 = vmatprep.subr.mxu0 0.0
  %97 = vmatpush1.msra.mxu0 0.0
  %98 = vmatprep.subr.mxu0 0.0
  %99 = vmatpush1.msra.mxu0 0.0
  %100 = vmatprep.subr.mxu0 0.0
  %101 = vmatpush1.msra.mxu0 0.0
  %102 = vmatprep.subr.mxu0 0.0
  %103 = vmatpush1.msra.mxu0 0.0
  %104 = vmatprep.subr.mxu0 0.0
  %105 = vmatpush1.msra.mxu0 0.0
  %106 = vmatprep.subr.mxu0 0.0
  %107 = vmatpush1.msra.mxu0 0.0
  %108 = vmatprep.subr.mxu0 0.0
  %109 = vmatpush1.msra.mxu0 0.0
  %110 = vmatprep.subr.mxu0 0.0
  %111 = vmatpush1.msra.mxu0 0.0
  %112 = vmatprep.subr.mxu0 0.0
  %113 = vmatpush1.msra.mxu0 0.0
  %114 = vmatprep.subr.mxu0 0.0
  %115 = vmatpush1.msra.mxu0 0.0
  %116 = vmatprep.subr.mxu0 0.0
  %117 = vmatpush1.msra.mxu0 0.0
  %118 = vmatprep.subr.mxu0 0.0
  %119 = vmatpush1.msra.mxu0 0.0
  %120 = vmatprep.subr.mxu0 0.0
  %121 = vmatpush1.msra.mxu0 0.0
  %122 = vmatprep.subr.mxu0 0.0
  %123 = vmatpush1.msra.mxu0 0.0
  %124 = vmatprep.subr.mxu0 0.0
  %125 = vmatpush1.msra.mxu0 0.0
  %126 = vmatprep.subr.mxu0 0.0
  %127 = vmatpush1.msra.mxu0 0.0
  %128 = vmatprep.subr.mxu0 0.0
  %129 = vmatpush1.msra.mxu0 0.0
  %130 = vmatprep.subr.mxu0 0.0
  %131 = vmatpush1.msra.mxu0 0.0
  %132 = vmatprep.subr.mxu0 0.0
  %133 = vmatpush1.msra.mxu0 0.0
  %134 = vmatprep.subr.mxu0 0.0
  %135 = vmatpush1.msra.mxu0 0.0
  %136 = vmatprep.mubr.f32.mxu0 0.0
  %137 = vmatmul.mubr.f32.gmra.mrb[0].mxu0 %v49
  %v138 = vpop.f32.mrb[0].mxu0
  %v139 = vadd.f32 %v45, %v138
  %v140 = vpop.f32.mrb[0].mxu0
  %141 = vmatprep.mubr.f32.mxu0 0.0
  %142 = vmatmul.mubr.f32.gmra.mrb[0].mxu0 %v52
  %v143 = vpop.f32.mrb[0].mxu0
  %v144 = vadd.f32 %v45, %v143
  %v145 = vpop.f32.mrb[0].mxu0
  %146 = vmatprep.mubr.f32.mxu0 0.0
  %147 = vmatmul.mubr.f32.gmra.mrb[0].mxu0 %v55
  %v148 = vpop.f32.mrb[0].mxu0
  %v149 = vadd.f32 %v45, %v148
  %v150 = vpop.f32.mrb[0].mxu0
  %151 = vmatprep.mubr.f32.mxu0 0.0
  %152 = vmatmul.mubr.f32.gmra.mrb[0].mxu0 %v58
  %v153 = vpop.f32.mrb[0].mxu0
  %v154 = vadd.f32 %v45, %v153
  %v155 = vpop.f32.mrb[0].mxu0
  %156 = vmatprep.mubr.f32.mxu0 0.0
  %157 = vmatmul.mubr.f32.gmra.mrb[0].mxu0 %v61
  %v158 = vpop.f32.mrb[0].mxu0
  %v159 = vadd.f32 %v45, %v158
  %v160 = vpop.f32.mrb[0].mxu0
  %161 = vmatprep.mubr.f32.mxu0 0.0
  %162 = vmatmul.mubr.f32.gmra.mrb[0].mxu0 %v64
  %v163 = vpop.f32.mrb[0].mxu0
  %v164 = vadd.f32 %v45, %v163
  %v165 = vpop.f32.mrb[0].mxu0
  %166 = vmatprep.mubr.f32.mxu0 0.0
  %167 = vmatmul.mubr.f32.gmra.mrb[0].mxu0 %v67
  %v168 = vpop.f32.mrb[0].mxu0
  %v169 = vadd.f32 %v45, %v168
  %v170 = vpop.f32.mrb[0].mxu0
  %171 = vmatprep.mubr.f32.mxu0 0.0
  %172 = vmatmul.mubr.f32.gmra.mrb[0].mxu0 %v70
  %v173 = vpop.f32.mrb[0].mxu0
  %v174 = vadd.f32 %v45, %v173
  %v175 = vpop.f32.mrb[0].mxu0
  %176 = vdwg.mxu0
  %177 = vst [vmem:[#allocation2] sm:$0xff] %v139
  %178 = vst [vmem:[#allocation2 + $0x8] sm:$0xff] %v144
  %179 = vst [vmem:[#allocation2 + $0x10] sm:$0xff] %v149
  %180 = vst [vmem:[#allocation2 + $0x18] sm:$0xff] %v154
  %181 = vst [vmem:[#allocation2 + $0x20] sm:$0xff] %v159
  %182 = vst [vmem:[#allocation2 + $0x28] sm:$0xff] %v164
  %183 = vst [vmem:[#allocation2 + $0x30] sm:$0xff] %v169
  %184 = vst [vmem:[#allocation2 + $0x38] sm:$0xff] %v174
  %185 = vst.msk [vmem:[#allocation3] sm:$0xff] %vm47, 0.0
  %186 = vst.msk [vmem:[#allocation4] sm:$0xff] %vm47, 0.0
  %187 = vst.msk [vmem:[#allocation5] sm:$0xff] %vm47, 0.0
  %v188 = vld [vmem:[%s3] sm:$0xff]
  %v189 = vld [vmem:[%s3 + $0x8] sm:$0xff]
  %v190 = vld [vmem:[%s3 + $0x10] sm:$0xff]
  %v191 = vld [vmem:[%s3 + $0x18] sm:$0xff]
  %v192 = vld [vmem:[%s1] sm:$0xff]
  %v193 = vsub.s32 %v192, 1
  %v194 = vld [vmem:[#allocation2] sm:$0xff]
  %v195 = vld [vmem:[#allocation3] sm:$0xff]
  %v197 = vsel %vm47, %v195, 0
  %199 = vmatprep.subr.mxu0 0.0
  %200 = vmatpush1.msra.mxu0 %v188
  %201 = vmatprep.subr.mxu0 0.0
  %202 = vmatpush1.msra.mxu0 %v189
  %203 = vmatprep.subr.mxu0 0.0
  %204 = vmatpush1.msra.mxu0 %v190
  %205 = vmatprep.subr.mxu0 0.0
  %206 = vmatpush1.msra.mxu0 %v191
  %207 = vmatprep.subr.mxu0 0.0
  %208 = vmatpush1.msra.mxu0 0.0
  %209 = vmatprep.subr.mxu0 0.0
  %210 = vmatpush1.msra.mxu0 0.0
  %211 = vmatprep.subr.mxu0 0.0
  %212 = vmatpush1.msra.mxu0 0.0
  %213 = vmatprep.subr.mxu0 0.0
  %214 = vmatpush1.msra.mxu0 0.0
  %215 = vmatprep.subr.mxu0 0.0
  %216 = vmatpush1.msra.mxu0 0.0
  %217 = vmatprep.subr.mxu0 0.0
  %218 = vmatpush1.msra.mxu0 0.0
  %219 = vmatprep.subr.mxu0 0.0
  %220 = vmatpush1.msra.mxu0 0.0
  %221 = vmatprep.subr.mxu0 0.0
  %222 = vmatpush1.msra.mxu0 0.0
  %223 = vmatprep.subr.mxu0 0.0
  %224 = vmatpush1.msra.mxu0 0.0
  %225 = vmatprep.subr.mxu0 0.0
  %226 = vmatpush1.msra.mxu0 0.0
  %227 = vmatprep.subr.mxu0 0.0
  %228 = vmatpush1.msra.mxu0 0.0
  %229 = vmatprep.subr.mxu0 0.0
  %230 = vmatpush1.msra.mxu0 0.0
  %231 = vmatprep.subr.mxu0 0.0
  %232 = vmatpush1.msra.mxu0 0.0
  %233 = vmatprep.subr.mxu0 0.0
  %234 = vmatpush1.msra.mxu0 0.0
  %235 = vmatprep.subr.mxu0 0.0
  %236 = vmatpush1.msra.mxu0 0.0
  %237 = vmatprep.subr.mxu0 0.0
  %238 = vmatpush1.msra.mxu0 0.0
  %239 = vmatprep.subr.mxu0 0.0
  %240 = vmatpush1.msra.mxu0 0.0
  %241 = vmatprep.subr.mxu0 0.0
  %242 = vmatpush1.msra.mxu0 0.0
  %243 = vmatprep.subr.mxu0 0.0
  %244 = vmatpush1.msra.mxu0 0.0
  %245 = vmatprep.subr.mxu0 0.0
  %246 = vmatpush1.msra.mxu0 0.0
  %247 = vmatprep.subr.mxu0 0.0
  %248 = vmatpush1.msra.mxu0 0.0
  %249 = vmatprep.subr.mxu0 0.0
  %250 = vmatpush1.msra.mxu0 0.0
  %251 = vmatprep.subr.mxu0 0.0
  %252 = vmatpush1.msra.mxu0 0.0
  %253 = vmatprep.subr.mxu0 0.0
  %254 = vmatpush1.msra.mxu0 0.0
  %255 = vmatprep.subr.mxu0 0.0
  %256 = vmatpush1.msra.mxu0 0.0
  %257 = vmatprep.subr.mxu0 0.0
  %258 = vmatpush1.msra.mxu0 0.0
  %259 = vmatprep.subr.mxu0 0.0
  %260 = vmatpush1.msra.mxu0 0.0
  %261 = vmatprep.subr.mxu0 0.0
  %262 = vmatpush1.msra.mxu0 0.0
  %263 = vmatprep.mubr.f32.mxu0 0.0
  %264 = vmatmul.mubr.f32.gmra.mrb[0].mxu0 %v197
  %v265 = vpop.f32.mrb[0].mxu0
  %v266 = vadd.f32 0.0, %v265
  %v267 = vpop.f32.mrb[0].mxu0
  %268 = vdwg.mxu0
  %v269 = vadd.f32 %v194, %v266
  %v270 = vxor.u32 %v269, 2147483648
  %v271 = vmul.f32 %v270, 1.442695
  %v272 = vpow.pop %v271
  %v273 = vadd.f32 %v272, 1.0
  %v274 = vrcp.pop %v273
  %v275 = vmul.f32 1.0, %v274
  %v276 = vtanh.pop %v269
  %v277 = vld [vmem:[#allocation4] sm:$0xff]
  %279 = vrot.lane.b32.xlu0 %v277, 32
  %v280 = vpop.permute.xlu0 %279
  %v282 = vmul.f32 %v275, %v280
  %284 = vrot.lane.b32.xlu0 %v276, 64
  %v285 = vpop.permute.xlu0 %284
  %v287 = vmul.f32 %v275, %v285
  %289 = vrot.lane.b32.xlu0 %v287, 32
  %v290 = vpop.permute.xlu0 %289
  %v292 = vadd.f32 %v282, %v290
  %v293 = vtanh.pop %v292
  %295 = vrot.lane.b32.xlu0 %v293, 64
  %v296 = vpop.permute.xlu0 %295
  %v298 = vmul.f32 %v275, %v296
  %300 = vrot.lane.b32.xlu0 %v292, 96
  %v301 = vpop.permute.xlu0 %300
  %303 = vst.msk [vmem:[#allocation4] sm:$0xff] %vm47, %v301
  %305 = vrot.lane.b32.xlu0 %v298, 32
  %v306 = vpop.permute.xlu0 %305
  %308 = vst.msk [vmem:[#allocation3] sm:$0xff] %vm47, %v306
  %vm309 = vcmp.eq.s32.totalorder %v193, 0
  %v310 = vld [vmem:[#allocation5] sm:$0xff]
  %v311 = vsel %vm309, 1, 0
  %312 = vset.pattern.permute.xlu0 0
  %313 = vperm.xlu0 %312, %v311
  %v314 = vpop.permute.xlu0 %313
  %vm315 = vcmp.eq.s32.totalorder %v314, 1
  %317 = vrot.lane.b32.xlu0 %v310, 96
  %v318 = vpop.permute.xlu0 %317
  %v320 = vsel %vm315, %v298, %v318
  %322 = vrot.lane.b32.xlu0 %v320, 32
  %v323 = vpop.permute.xlu0 %322
  %325 = vst.msk [vmem:[#allocation5] sm:$0xff] %vm47, %v323
  %s326 = scalar_lea.vmem [#allocation2], 8
  %v327 = vld [vmem:[%s326] sm:$0xff]
  %v328 = vld [vmem:[#allocation3] sm:$0xff]
  %v330 = vsel %vm47, %v328, 0
  %332 = vmatprep.subr.mxu0 0.0
  %333 = vmatpush1.msra.mxu0 %v188
  %334 = vmatprep.subr.mxu0 0.0
  %335 = vmatpush1.msra.mxu0 %v189
  %336 = vmatprep.subr.mxu0 0.0
  %337 = vmatpush1.msra.mxu0 %v190
  %338 = vmatprep.subr.mxu0 0.0
  %339 = vmatpush1.msra.mxu0 %v191
  %340 = vmatprep.subr.mxu0 0.0
  %341 = vmatpush1.msra.mxu0 0.0
  %342 = vmatprep.subr.mxu0 0.0
  %343 = vmatpush1.msra.mxu0 0.0
  %344 = vmatprep.subr.mxu0 0.0
  %345 = vmatpush1.msra.mxu0 0.0
  %346 = vmatprep.subr.mxu0 0.0
  %347 = vmatpush1.msra.mxu0 0.0
  %348 = vmatprep.subr.mxu0 0.0
  %349 = vmatpush1.msra.mxu0 0.0
  %350 = vmatprep.subr.mxu0 0.0
  %351 = vmatpush1.msra.mxu0 0.0
  %352 = vmatprep.subr.mxu0 0.0
  %353 = vmatpush1.msra.mxu0 0.0
  %354 = vmatprep.subr.mxu0 0.0
  %355 = vmatpush1.msra.mxu0 0.0
  %356 = vmatprep.subr.mxu0 0.0
  %357 = vmatpush1.msra.mxu0 0.0
  %358 = vmatprep.subr.mxu0 0.0
  %359 = vmatpush1.msra.mxu0 0.0
  %360 = vmatprep.subr.mxu0 0.0
  %361 = vmatpush1.msra.mxu0 0.0
  %362 = vmatprep.subr.mxu0 0.0
  %363 = vmatpush1.msra.mxu0 0.0
  %364 = vmatprep.subr.mxu0 0.0
  %365 = vmatpush1.msra.mxu0 0.0
  %366 = vmatprep.subr.mxu0 0.0
  %367 = vmatpush1.msra.mxu0 0.0
  %368 = vmatprep.subr.mxu0 0.0
  %369 = vmatpush1.msra.mxu0 0.0
  %370 = vmatprep.subr.mxu0 0.0
  %371 = vmatpush1.msra.mxu0 0.0
  %372 = vmatprep.subr.mxu0 0.0
  %373 = vmatpush1.msra.mxu0 0.0
  %374 = vmatprep.subr.mxu0 0.0
  %375 = vmatpush1.msra.mxu0 0.0
  %376 = vmatprep.subr.mxu0 0.0
  %377 = vmatpush1.msra.mxu0 0.0
  %378 = vmatprep.subr.mxu0 0.0
  %379 = vmatpush1.msra.mxu0 0.0
  %380 = vmatprep.subr.mxu0 0.0
  %381 = vmatpush1.msra.mxu0 0.0
  %382 = vmatprep.subr.mxu0 0.0
  %383 = vmatpush1.msra.mxu0 0.0
  %384 = vmatprep.subr.mxu0 0.0
  %385 = vmatpush1.msra.mxu0 0.0
  %386 = vmatprep.subr.mxu0 0.0
  %387 = vmatpush1.msra.mxu0 0.0
  %388 = vmatprep.subr.mxu0 0.0
  %389 = vmatpush1.msra.mxu0 0.0
  %390 = vmatprep.subr.mxu0 0.0
  %391 = vmatpush1.msra.mxu0 0.0
  %392 = vmatprep.subr.mxu0 0.0
  %393 = vmatpush1.msra.mxu0 0.0
  %394 = vmatprep.subr.mxu0 0.0
  %395 = vmatpush1.msra.mxu0 0.0
  %396 = vmatprep.mubr.f32.mxu0 0.0
  %397 = vmatmul.mubr.f32.gmra.mrb[0].mxu0 %v330
  %v398 = vpop.f32.mrb[0].mxu0
  %v399 = vadd.f32 0.0, %v398
  %v400 = vpop.f32.mrb[0].mxu0
  %401 = vdwg.mxu0
  %v402 = vadd.f32 %v327, %v399
  %v403 = vxor.u32 %v402, 2147483648
  %v404 = vmul.f32 %v403, 1.442695
  %v405 = vpow.pop %v404
  %v406 = vadd.f32 %v405, 1.0
  %v407 = vrcp.pop %v406
  %v408 = vmul.f32 1.0, %v407
  %v409 = vtanh.pop %v402
  %v410 = vld [vmem:[#allocation4] sm:$0xff]
  %412 = vrot.lane.b32.xlu0 %v410, 32
  %v413 = vpop.permute.xlu0 %412
  %v415 = vmul.f32 %v408, %v413
  %417 = vrot.lane.b32.xlu0 %v409, 64
  %v418 = vpop.permute.xlu0 %417
  %v420 = vmul.f32 %v408, %v418
  %422 = vrot.lane.b32.xlu0 %v420, 32
  %v423 = vpop.permute.xlu0 %422
  %v425 = vadd.f32 %v415, %v423
  %v426 = vtanh.pop %v425
  %428 = vrot.lane.b32.xlu0 %v426, 64
  %v429 = vpop.permute.xlu0 %428
  %v431 = vmul.f32 %v408, %v429
  %433 = vrot.lane.b32.xlu0 %v425, 96
  %v434 = vpop.permute.xlu0 %433
  %436 = vst.msk [vmem:[#allocation4] sm:$0xff] %vm47, %v434
  %438 = vrot.lane.b32.xlu0 %v431, 32
  %v439 = vpop.permute.xlu0 %438
  %441 = vst.msk [vmem:[#allocation3] sm:$0xff] %vm47, %v439
  %vm442 = vcmp.eq.s32.totalorder %v193, 1
  %v443 = vld [vmem:[#allocation5] sm:$0xff]
  %v444 = vsel %vm442, 1, 0
  %445 = vset.pattern.permute.xlu0 0
  %446 = vperm.xlu0 %445, %v444
  %v447 = vpop.permute.xlu0 %446
  %vm448 = vcmp.eq.s32.totalorder %v447, 1
  %450 = vrot.lane.b32.xlu0 %v443, 96
  %v451 = vpop.permute.xlu0 %450
  %v453 = vsel %vm448, %v431, %v451
  %455 = vrot.lane.b32.xlu0 %v453, 32
  %v456 = vpop.permute.xlu0 %455
  %458 = vst.msk [vmem:[#allocation5] sm:$0xff] %vm47, %v456
  %s459 = scalar_lea.vmem [#allocation2], 16
  %v460 = vld [vmem:[%s459] sm:$0xff]
  %v461 = vld [vmem:[#allocation3] sm:$0xff]
  %v463 = vsel %vm47, %v461, 0
  %465 = vmatprep.subr.mxu0 0.0
  %466 = vmatpush1.msra.mxu0 %v188
  %467 = vmatprep.subr.mxu0 0.0
  %468 = vmatpush1.msra.mxu0 %v189
  %469 = vmatprep.subr.mxu0 0.0
  %470 = vmatpush1.msra.mxu0 %v190
  %471 = vmatprep.subr.mxu0 0.0
  %472 = vmatpush1.msra.mxu0 %v191
  %473 = vmatprep.subr.mxu0 0.0
  %474 = vmatpush1.msra.mxu0 0.0
  %475 = vmatprep.subr.mxu0 0.0
  %476 = vmatpush1.msra.mxu0 0.0
  %477 = vmatprep.subr.mxu0 0.0
  %478 = vmatpush1.msra.mxu0 0.0
  %479 = vmatprep.subr.mxu0 0.0
  %480 = vmatpush1.msra.mxu0 0.0
  %481 = vmatprep.subr.mxu0 0.0
  %482 = vmatpush1.msra.mxu0 0.0
  %483 = vmatprep.subr.mxu0 0.0
  %484 = vmatpush1.msra.mxu0 0.0
  %485 = vmatprep.subr.mxu0 0.0
  %486 = vmatpush1.msra.mxu0 0.0
  %487 = vmatprep.subr.mxu0 0.0
  %488 = vmatpush1.msra.mxu0 0.0
  %489 = vmatprep.subr.mxu0 0.0
  %490 = vmatpush1.msra.mxu0 0.0
  %491 = vmatprep.subr.mxu0 0.0
  %492 = vmatpush1.msra.mxu0 0.0
  %493 = vmatprep.subr.mxu0 0.0
  %494 = vmatpush1.msra.mxu0 0.0
  %495 = vmatprep.subr.mxu0 0.0
  %496 = vmatpush1.msra.mxu0 0.0
  %497 = vmatprep.subr.mxu0 0.0
  %498 = vmatpush1.msra.mxu0 0.0
  %499 = vmatprep.subr.mxu0 0.0
  %500 = vmatpush1.msra.mxu0 0.0
  %501 = vmatprep.subr.mxu0 0.0
  %502 = vmatpush1.msra.mxu0 0.0
  %503 = vmatprep.subr.mxu0 0.0
  %504 = vmatpush1.msra.mxu0 0.0
  %505 = vmatprep.subr.mxu0 0.0
  %506 = vmatpush1.msra.mxu0 0.0
  %507 = vmatprep.subr.mxu0 0.0
  %508 = vmatpush1.msra.mxu0 0.0
  %509 = vmatprep.subr.mxu0 0.0
  %510 = vmatpush1.msra.mxu0 0.0
  %511 = vmatprep.subr.mxu0 0.0
  %512 = vmatpush1.msra.mxu0 0.0
  %513 = vmatprep.subr.mxu0 0.0
  %514 = vmatpush1.msra.mxu0 0.0
  %515 = vmatprep.subr.mxu0 0.0
  %516 = vmatpush1.msra.mxu0 0.0
  %517 = vmatprep.subr.mxu0 0.0
  %518 = vmatpush1.msra.mxu0 0.0
  %519 = vmatprep.subr.mxu0 0.0
  %520 = vmatpush1.msra.mxu0 0.0
  %521 = vmatprep.subr.mxu0 0.0
  %522 = vmatpush1.msra.mxu0 0.0
  %523 = vmatprep.subr.mxu0 0.0
  %524 = vmatpush1.msra.mxu0 0.0
  %525 = vmatprep.subr.mxu0 0.0
  %526 = vmatpush1.msra.mxu0 0.0
  %527 = vmatprep.subr.mxu0 0.0
  %528 = vmatpush1.msra.mxu0 0.0
  %529 = vmatprep.mubr.f32.mxu0 0.0
  %530 = vmatmul.mubr.f32.gmra.mrb[0].mxu0 %v463
  %v531 = vpop.f32.mrb[0].mxu0
  %v532 = vadd.f32 0.0, %v531
  %v533 = vpop.f32.mrb[0].mxu0
  %534 = vdwg.mxu0
  %v535 = vadd.f32 %v460, %v532
  %v536 = vxor.u32 %v535, 2147483648
  %v537 = vmul.f32 %v536, 1.442695
  %v538 = vpow.pop %v537
  %v539 = vadd.f32 %v538, 1.0
  %v540 = vrcp.pop %v539
  %v541 = vmul.f32 1.0, %v540
  %v542 = vtanh.pop %v535
  %v543 = vld [vmem:[#allocation4] sm:$0xff]
  %545 = vrot.lane.b32.xlu0 %v543, 32
  %v546 = vpop.permute.xlu0 %545
  %v548 = vmul.f32 %v541, %v546
  %550 = vrot.lane.b32.xlu0 %v542, 64
  %v551 = vpop.permute.xlu0 %550
  %v553 = vmul.f32 %v541, %v551
  %555 = vrot.lane.b32.xlu0 %v553, 32
  %v556 = vpop.permute.xlu0 %555
  %v558 = vadd.f32 %v548, %v556
  %v559 = vtanh.pop %v558
  %561 = vrot.lane.b32.xlu0 %v559, 64
  %v562 = vpop.permute.xlu0 %561
  %v564 = vmul.f32 %v541, %v562
  %566 = vrot.lane.b32.xlu0 %v558, 96
  %v567 = vpop.permute.xlu0 %566
  %569 = vst.msk [vmem:[#allocation4] sm:$0xff] %vm47, %v567
  %571 = vrot.lane.b32.xlu0 %v564, 32
  %v572 = vpop.permute.xlu0 %571
  %574 = vst.msk [vmem:[#allocation3] sm:$0xff] %vm47, %v572
  %vm575 = vcmp.eq.s32.totalorder %v193, 2
  %v576 = vld [vmem:[#allocation5] sm:$0xff]
  %v577 = vsel %vm575, 1, 0
  %578 = vset.pattern.permute.xlu0 0
  %579 = vperm.xlu0 %578, %v577
  %v580 = vpop.permute.xlu0 %579
  %vm581 = vcmp.eq.s32.totalorder %v580, 1
  %583 = vrot.lane.b32.xlu0 %v576, 96
  %v584 = vpop.permute.xlu0 %583
  %v586 = vsel %vm581, %v564, %v584
  %588 = vrot.lane.b32.xlu0 %v586, 32
  %v589 = vpop.permute.xlu0 %588
  %591 = vst.msk [vmem:[#allocation5] sm:$0xff] %vm47, %v589
  %s592 = scalar_lea.vmem [#allocation2], 24
  %v593 = vld [vmem:[%s592] sm:$0xff]
  %v594 = vld [vmem:[#allocation3] sm:$0xff]
  %v596 = vsel %vm47, %v594, 0
  %598 = vmatprep.subr.mxu0 0.0
  %599 = vmatpush1.msra.mxu0 %v188
  %600 = vmatprep.subr.mxu0 0.0
  %601 = vmatpush1.msra.mxu0 %v189
  %602 = vmatprep.subr.mxu0 0.0
  %603 = vmatpush1.msra.mxu0 %v190
  %604 = vmatprep.subr.mxu0 0.0
  %605 = vmatpush1.msra.mxu0 %v191
  %606 = vmatprep.subr.mxu0 0.0
  %607 = vmatpush1.msra.mxu0 0.0
  %608 = vmatprep.subr.mxu0 0.0
  %609 = vmatpush1.msra.mxu0 0.0
  %610 = vmatprep.subr.mxu0 0.0
  %611 = vmatpush1.msra.mxu0 0.0
  %612 = vmatprep.subr.mxu0 0.0
  %613 = vmatpush1.msra.mxu0 0.0
  %614 = vmatprep.subr.mxu0 0.0
  %615 = vmatpush1.msra.mxu0 0.0
  %616 = vmatprep.subr.mxu0 0.0
  %617 = vmatpush1.msra.mxu0 0.0
  %618 = vmatprep.subr.mxu0 0.0
  %619 = vmatpush1.msra.mxu0 0.0
  %620 = vmatprep.subr.mxu0 0.0
  %621 = vmatpush1.msra.mxu0 0.0
  %622 = vmatprep.subr.mxu0 0.0
  %623 = vmatpush1.msra.mxu0 0.0
  %624 = vmatprep.subr.mxu0 0.0
  %625 = vmatpush1.msra.mxu0 0.0
  %626 = vmatprep.subr.mxu0 0.0
  %627 = vmatpush1.msra.mxu0 0.0
  %628 = vmatprep.subr.mxu0 0.0
  %629 = vmatpush1.msra.mxu0 0.0
  %630 = vmatprep.subr.mxu0 0.0
  %631 = vmatpush1.msra.mxu0 0.0
  %632 = vmatprep.subr.mxu0 0.0
  %633 = vmatpush1.msra.mxu0 0.0
  %634 = vmatprep.subr.mxu0 0.0
  %635 = vmatpush1.msra.mxu0 0.0
  %636 = vmatprep.subr.mxu0 0.0
  %637 = vmatpush1.msra.mxu0 0.0
  %638 = vmatprep.subr.mxu0 0.0
  %639 = vmatpush1.msra.mxu0 0.0
  %640 = vmatprep.subr.mxu0 0.0
  %641 = vmatpush1.msra.mxu0 0.0
  %642 = vmatprep.subr.mxu0 0.0
  %643 = vmatpush1.msra.mxu0 0.0
  %644 = vmatprep.subr.mxu0 0.0
  %645 = vmatpush1.msra.mxu0 0.0
  %646 = vmatprep.subr.mxu0 0.0
  %647 = vmatpush1.msra.mxu0 0.0
  %648 = vmatprep.subr.mxu0 0.0
  %649 = vmatpush1.msra.mxu0 0.0
  %650 = vmatprep.subr.mxu0 0.0
  %651 = vmatpush1.msra.mxu0 0.0
  %652 = vmatprep.subr.mxu0 0.0
  %653 = vmatpush1.msra.mxu0 0.0
  %654 = vmatprep.subr.mxu0 0.0
  %655 = vmatpush1.msra.mxu0 0.0
  %656 = vmatprep.subr.mxu0 0.0
  %657 = vmatpush1.msra.mxu0 0.0
  %658 = vmatprep.subr.mxu0 0.0
  %659 = vmatpush1.msra.mxu0 0.0
  %660 = vmatprep.subr.mxu0 0.0
  %661 = vmatpush1.msra.mxu0 0.0
  %662 = vmatprep.mubr.f32.mxu0 0.0
  %663 = vmatmul.mubr.f32.gmra.mrb[0].mxu0 %v596
  %v664 = vpop.f32.mrb[0].mxu0
  %v665 = vadd.f32 0.0, %v664
  %v666 = vpop.f32.mrb[0].mxu0
  %667 = vdwg.mxu0
  %v668 = vadd.f32 %v593, %v665
  %v669 = vxor.u32 %v668, 2147483648
  %v670 = vmul.f32 %v669, 1.442695
  %v671 = vpow.pop %v670
  %v672 = vadd.f32 %v671, 1.0
  %v673 = vrcp.pop %v672
  %v674 = vmul.f32 1.0, %v673
  %v675 = vtanh.pop %v668
  %v676 = vld [vmem:[#allocation4] sm:$0xff]
  %678 = vrot.lane.b32.xlu0 %v676, 32
  %v679 = vpop.permute.xlu0 %678
  %v681 = vmul.f32 %v674, %v679
  %683 = vrot.lane.b32.xlu0 %v675, 64
  %v684 = vpop.permute.xlu0 %683
  %v686 = vmul.f32 %v674, %v684
  %688 = vrot.lane.b32.xlu0 %v686, 32
  %v689 = vpop.permute.xlu0 %688
  %v691 = vadd.f32 %v681, %v689
  %v692 = vtanh.pop %v691
  %694 = vrot.lane.b32.xlu0 %v692, 64
  %v695 = vpop.permute.xlu0 %694
  %v697 = vmul.f32 %v674, %v695
  %699 = vrot.lane.b32.xlu0 %v691, 96
  %v700 = vpop.permute.xlu0 %699
  %702 = vst.msk [vmem:[#allocation4] sm:$0xff] %vm47, %v700
  %704 = vrot.lane.b32.xlu0 %v697, 32
  %v705 = vpop.permute.xlu0 %704
  %707 = vst.msk [vmem:[#allocation3] sm:$0xff] %vm47, %v705
  %vm708 = vcmp.eq.s32.totalorder %v193, 3
  %v709 = vld [vmem:[#allocation5] sm:$0xff]
  %v710 = vsel %vm708, 1, 0
  %711 = vset.pattern.permute.xlu0 0
  %712 = vperm.xlu0 %711, %v710
  %v713 = vpop.permute.xlu0 %712
  %vm714 = vcmp.eq.s32.totalorder %v713, 1
  %716 = vrot.lane.b32.xlu0 %v709, 96
  %v717 = vpop.permute.xlu0 %716
  %v719 = vsel %vm714, %v697, %v717
  %721 = vrot.lane.b32.xlu0 %v719, 32
  %v722 = vpop.permute.xlu0 %721
  %724 = vst.msk [vmem:[#allocation5] sm:$0xff] %vm47, %v722
  %s725 = scalar_lea.vmem [#allocation2], 32
  %v726 = vld [vmem:[%s725] sm:$0xff]
  %v727 = vld [vmem:[#allocation3] sm:$0xff]
  %v729 = vsel %vm47, %v727, 0
  %731 = vmatprep.subr.mxu0 0.0
  %732 = vmatpush1.msra.mxu0 %v188
  %733 = vmatprep.subr.mxu0 0.0
  %734 = vmatpush1.msra.mxu0 %v189
  %735 = vmatprep.subr.mxu0 0.0
  %736 = vmatpush1.msra.mxu0 %v190
  %737 = vmatprep.subr.mxu0 0.0
  %738 = vmatpush1.msra.mxu0 %v191
  %739 = vmatprep.subr.mxu0 0.0
  %740 = vmatpush1.msra.mxu0 0.0
  %741 = vmatprep.subr.mxu0 0.0
  %742 = vmatpush1.msra.mxu0 0.0
  %743 = vmatprep.subr.mxu0 0.0
  %744 = vmatpush1.msra.mxu0 0.0
  %745 = vmatprep.subr.mxu0 0.0
  %746 = vmatpush1.msra.mxu0 0.0
  %747 = vmatprep.subr.mxu0 0.0
  %748 = vmatpush1.msra.mxu0 0.0
  %749 = vmatprep.subr.mxu0 0.0
  %750 = vmatpush1.msra.mxu0 0.0
  %751 = vmatprep.subr.mxu0 0.0
  %752 = vmatpush1.msra.mxu0 0.0
  %753 = vmatprep.subr.mxu0 0.0
  %754 = vmatpush1.msra.mxu0 0.0
  %755 = vmatprep.subr.mxu0 0.0
  %756 = vmatpush1.msra.mxu0 0.0
  %757 = vmatprep.subr.mxu0 0.0
  %758 = vmatpush1.msra.mxu0 0.0
  %759 = vmatprep.subr.mxu0 0.0
  %760 = vmatpush1.msra.mxu0 0.0
  %761 = vmatprep.subr.mxu0 0.0
  %762 = vmatpush1.msra.mxu0 0.0
  %763 = vmatprep.subr.mxu0 0.0
  %764 = vmatpush1.msra.mxu0 0.0
  %765 = vmatprep.subr.mxu0 0.0
  %766 = vmatpush1.msra.mxu0 0.0
  %767 = vmatprep.subr.mxu0 0.0
  %768 = vmatpush1.msra.mxu0 0.0
  %769 = vmatprep.subr.mxu0 0.0
  %770 = vmatpush1.msra.mxu0 0.0
  %771 = vmatprep.subr.mxu0 0.0
  %772 = vmatpush1.msra.mxu0 0.0
  %773 = vmatprep.subr.mxu0 0.0
  %774 = vmatpush1.msra.mxu0 0.0
  %775 = vmatprep.subr.mxu0 0.0
  %776 = vmatpush1.msra.mxu0 0.0
  %777 = vmatprep.subr.mxu0 0.0
  %778 = vmatpush1.msra.mxu0 0.0
  %779 = vmatprep.subr.mxu0 0.0
  %780 = vmatpush1.msra.mxu0 0.0
  %781 = vmatprep.subr.mxu0 0.0
  %782 = vmatpush1.msra.mxu0 0.0
  %783 = vmatprep.subr.mxu0 0.0
  %784 = vmatpush1.msra.mxu0 0.0
  %785 = vmatprep.subr.mxu0 0.0
  %786 = vmatpush1.msra.mxu0 0.0
  %787 = vmatprep.subr.mxu0 0.0
  %788 = vmatpush1.msra.mxu0 0.0
  %789 = vmatprep.subr.mxu0 0.0
  %790 = vmatpush1.msra.mxu0 0.0
  %791 = vmatprep.subr.mxu0 0.0
  %792 = vmatpush1.msra.mxu0 0.0
  %793 = vmatprep.subr.mxu0 0.0
  %794 = vmatpush1.msra.mxu0 0.0
  %795 = vmatprep.mubr.f32.mxu0 0.0
  %796 = vmatmul.mubr.f32.gmra.mrb[0].mxu0 %v729
  %v797 = vpop.f32.mrb[0].mxu0
  %v798 = vadd.f32 0.0, %v797
  %v799 = vpop.f32.mrb[0].mxu0
  %800 = vdwg.mxu0
  %v801 = vadd.f32 %v726, %v798
  %v802 = vxor.u32 %v801, 2147483648
  %v803 = vmul.f32 %v802, 1.442695
  %v804 = vpow.pop %v803
  %v805 = vadd.f32 %v804, 1.0
  %v806 = vrcp.pop %v805
  %v807 = vmul.f32 1.0, %v806
  %v808 = vtanh.pop %v801
  %v809 = vld [vmem:[#allocation4] sm:$0xff]
  %811 = vrot.lane.b32.xlu0 %v809, 32
  %v812 = vpop.permute.xlu0 %811
  %v814 = vmul.f32 %v807, %v812
  %816 = vrot.lane.b32.xlu0 %v808, 64
  %v817 = vpop.permute.xlu0 %816
  %v819 = vmul.f32 %v807, %v817
  %821 = vrot.lane.b32.xlu0 %v819, 32
  %v822 = vpop.permute.xlu0 %821
  %v824 = vadd.f32 %v814, %v822
  %v825 = vtanh.pop %v824
  %827 = vrot.lane.b32.xlu0 %v825, 64
  %v828 = vpop.permute.xlu0 %827
  %v830 = vmul.f32 %v807, %v828
  %832 = vrot.lane.b32.xlu0 %v824, 96
  %v833 = vpop.permute.xlu0 %832
  %835 = vst.msk [vmem:[#allocation4] sm:$0xff] %vm47, %v833
  %837 = vrot.lane.b32.xlu0 %v830, 32
  %v838 = vpop.permute.xlu0 %837
  %840 = vst.msk [vmem:[#allocation3] sm:$0xff] %vm47, %v838
  %vm841 = vcmp.eq.s32.totalorder %v193, 4
  %v842 = vld [vmem:[#allocation5] sm:$0xff]
  %v843 = vsel %vm841, 1, 0
  %844 = vset.pattern.permute.xlu0 0
  %845 = vperm.xlu0 %844, %v843
  %v846 = vpop.permute.xlu0 %845
  %vm847 = vcmp.eq.s32.totalorder %v846, 1
  %849 = vrot.lane.b32.xlu0 %v842, 96
  %v850 = vpop.permute.xlu0 %849
  %v852 = vsel %vm847, %v830, %v850
  %854 = vrot.lane.b32.xlu0 %v852, 32
  %v855 = vpop.permute.xlu0 %854
  %857 = vst.msk [vmem:[#allocation5] sm:$0xff] %vm47, %v855
  %s858 = scalar_lea.vmem [#allocation2], 40
  %v859 = vld [vmem:[%s858] sm:$0xff]
  %v860 = vld [vmem:[#allocation3] sm:$0xff]
  %v862 = vsel %vm47, %v860, 0
  %864 = vmatprep.subr.mxu0 0.0
  %865 = vmatpush1.msra.mxu0 %v188
  %866 = vmatprep.subr.mxu0 0.0
  %867 = vmatpush1.msra.mxu0 %v189
  %868 = vmatprep.subr.mxu0 0.0
  %869 = vmatpush1.msra.mxu0 %v190
  %870 = vmatprep.subr.mxu0 0.0
  %871 = vmatpush1.msra.mxu0 %v191
  %872 = vmatprep.subr.mxu0 0.0
  %873 = vmatpush1.msra.mxu0 0.0
  %874 = vmatprep.subr.mxu0 0.0
  %875 = vmatpush1.msra.mxu0 0.0
  %876 = vmatprep.subr.mxu0 0.0
  %877 = vmatpush1.msra.mxu0 0.0
  %878 = vmatprep.subr.mxu0 0.0
  %879 = vmatpush1.msra.mxu0 0.0
  %880 = vmatprep.subr.mxu0 0.0
  %881 = vmatpush1.msra.mxu0 0.0
  %882 = vmatprep.subr.mxu0 0.0
  %883 = vmatpush1.msra.mxu0 0.0
  %884 = vmatprep.subr.mxu0 0.0
  %885 = vmatpush1.msra.mxu0 0.0
  %886 = vmatprep.subr.mxu0 0.0
  %887 = vmatpush1.msra.mxu0 0.0
  %888 = vmatprep.subr.mxu0 0.0
  %889 = vmatpush1.msra.mxu0 0.0
  %890 = vmatprep.subr.mxu0 0.0
  %891 = vmatpush1.msra.mxu0 0.0
  %892 = vmatprep.subr.mxu0 0.0
  %893 = vmatpush1.msra.mxu0 0.0
  %894 = vmatprep.subr.mxu0 0.0
  %895 = vmatpush1.msra.mxu0 0.0
  %896 = vmatprep.subr.mxu0 0.0
  %897 = vmatpush1.msra.mxu0 0.0
  %898 = vmatprep.subr.mxu0 0.0
  %899 = vmatpush1.msra.mxu0 0.0
  %900 = vmatprep.subr.mxu0 0.0
  %901 = vmatpush1.msra.mxu0 0.0
  %902 = vmatprep.subr.mxu0 0.0
  %903 = vmatpush1.msra.mxu0 0.0
  %904 = vmatprep.subr.mxu0 0.0
  %905 = vmatpush1.msra.mxu0 0.0
  %906 = vmatprep.subr.mxu0 0.0
  %907 = vmatpush1.msra.mxu0 0.0
  %908 = vmatprep.subr.mxu0 0.0
  %909 = vmatpush1.msra.mxu0 0.0
  %910 = vmatprep.subr.mxu0 0.0
  %911 = vmatpush1.msra.mxu0 0.0
  %912 = vmatprep.subr.mxu0 0.0
  %913 = vmatpush1.msra.mxu0 0.0
  %914 = vmatprep.subr.mxu0 0.0
  %915 = vmatpush1.msra.mxu0 0.0
  %916 = vmatprep.subr.mxu0 0.0
  %917 = vmatpush1.msra.mxu0 0.0
  %918 = vmatprep.subr.mxu0 0.0
  %919 = vmatpush1.msra.mxu0 0.0
  %920 = vmatprep.subr.mxu0 0.0
  %921 = vmatpush1.msra.mxu0 0.0
  %922 = vmatprep.subr.mxu0 0.0
  %923 = vmatpush1.msra.mxu0 0.0
  %924 = vmatprep.subr.mxu0 0.0
  %925 = vmatpush1.msra.mxu0 0.0
  %926 = vmatprep.subr.mxu0 0.0
  %927 = vmatpush1.msra.mxu0 0.0
  %928 = vmatprep.mubr.f32.mxu0 0.0
  %929 = vmatmul.mubr.f32.gmra.mrb[0].mxu0 %v862
  %v930 = vpop.f32.mrb[0].mxu0
  %v931 = vadd.f32 0.0, %v930
  %v932 = vpop.f32.mrb[0].mxu0
  %933 = vdwg.mxu0
  %v934 = vadd.f32 %v859, %v931
  %v935 = vxor.u32 %v934, 2147483648
  %v936 = vmul.f32 %v935, 1.442695
  %v937 = vpow.pop %v936
  %v938 = vadd.f32 %v937, 1.0
  %v939 = vrcp.pop %v938
  %v940 = vmul.f32 1.0, %v939
  %v941 = vtanh.pop %v934
  %v942 = vld [vmem:[#allocation4] sm:$0xff]
  %944 = vrot.lane.b32.xlu0 %v942, 32
  %v945 = vpop.permute.xlu0 %944
  %v947 = vmul.f32 %v940, %v945
  %949 = vrot.lane.b32.xlu0 %v941, 64
  %v950 = vpop.permute.xlu0 %949
  %v952 = vmul.f32 %v940, %v950
  %954 = vrot.lane.b32.xlu0 %v952, 32
  %v955 = vpop.permute.xlu0 %954
  %v957 = vadd.f32 %v947, %v955
  %v958 = vtanh.pop %v957
  %960 = vrot.lane.b32.xlu0 %v958, 64
  %v961 = vpop.permute.xlu0 %960
  %v963 = vmul.f32 %v940, %v961
  %965 = vrot.lane.b32.xlu0 %v957, 96
  %v966 = vpop.permute.xlu0 %965
  %968 = vst.msk [vmem:[#allocation4] sm:$0xff] %vm47, %v966
  %970 = vrot.lane.b32.xlu0 %v963, 32
  %v971 = vpop.permute.xlu0 %970
  %973 = vst.msk [vmem:[#allocation3] sm:$0xff] %vm47, %v971
  %vm974 = vcmp.eq.s32.totalorder %v193, 5
  %v975 = vld [vmem:[#allocation5] sm:$0xff]
  %v976 = vsel %vm974, 1, 0
  %977 = vset.pattern.permute.xlu0 0
  %978 = vperm.xlu0 %977, %v976
  %v979 = vpop.permute.xlu0 %978
  %vm980 = vcmp.eq.s32.totalorder %v979, 1
  %982 = vrot.lane.b32.xlu0 %v975, 96
  %v983 = vpop.permute.xlu0 %982
  %v985 = vsel %vm980, %v963, %v983
  %987 = vrot.lane.b32.xlu0 %v985, 32
  %v988 = vpop.permute.xlu0 %987
  %990 = vst.msk [vmem:[#allocation5] sm:$0xff] %vm47, %v988
  %s991 = scalar_lea.vmem [#allocation2], 48
  %v992 = vld [vmem:[%s991] sm:$0xff]
  %v993 = vld [vmem:[#allocation3] sm:$0xff]
  %v995 = vsel %vm47, %v993, 0
  %997 = vmatprep.subr.mxu0 0.0
  %998 = vmatpush1.msra.mxu0 %v188
  %999 = vmatprep.subr.mxu0 0.0
  %1000 = vmatpush1.msra.mxu0 %v189
  %1001 = vmatprep.subr.mxu0 0.0
  %1002 = vmatpush1.msra.mxu0 %v190
  %1003 = vmatprep.subr.mxu0 0.0
  %1004 = vmatpush1.msra.mxu0 %v191
  %1005 = vmatprep.subr.mxu0 0.0
  %1006 = vmatpush1.msra.mxu0 0.0
  %1007 = vmatprep.subr.mxu0 0.0
  %1008 = vmatpush1.msra.mxu0 0.0
  %1009 = vmatprep.subr.mxu0 0.0
  %1010 = vmatpush1.msra.mxu0 0.0
  %1011 = vmatprep.subr.mxu0 0.0
  %1012 = vmatpush1.msra.mxu0 0.0
  %1013 = vmatprep.subr.mxu0 0.0
  %1014 = vmatpush1.msra.mxu0 0.0
  %1015 = vmatprep.subr.mxu0 0.0
  %1016 = vmatpush1.msra.mxu0 0.0
  %1017 = vmatprep.subr.mxu0 0.0
  %1018 = vmatpush1.msra.mxu0 0.0
  %1019 = vmatprep.subr.mxu0 0.0
  %1020 = vmatpush1.msra.mxu0 0.0
  %1021 = vmatprep.subr.mxu0 0.0
  %1022 = vmatpush1.msra.mxu0 0.0
  %1023 = vmatprep.subr.mxu0 0.0
  %1024 = vmatpush1.msra.mxu0 0.0
  %1025 = vmatprep.subr.mxu0 0.0
  %1026 = vmatpush1.msra.mxu0 0.0
  %1027 = vmatprep.subr.mxu0 0.0
  %1028 = vmatpush1.msra.mxu0 0.0
  %1029 = vmatprep.subr.mxu0 0.0
  %1030 = vmatpush1.msra.mxu0 0.0
  %1031 = vmatprep.subr.mxu0 0.0
  %1032 = vmatpush1.msra.mxu0 0.0
  %1033 = vmatprep.subr.mxu0 0.0
  %1034 = vmatpush1.msra.mxu0 0.0
  %1035 = vmatprep.subr.mxu0 0.0
  %1036 = vmatpush1.msra.mxu0 0.0
  %1037 = vmatprep.subr.mxu0 0.0
  %1038 = vmatpush1.msra.mxu0 0.0
  %1039 = vmatprep.subr.mxu0 0.0
  %1040 = vmatpush1.msra.mxu0 0.0
  %1041 = vmatprep.subr.mxu0 0.0
  %1042 = vmatpush1.msra.mxu0 0.0
  %1043 = vmatprep.subr.mxu0 0.0
  %1044 = vmatpush1.msra.mxu0 0.0
  %1045 = vmatprep.subr.mxu0 0.0
  %1046 = vmatpush1.msra.mxu0 0.0
  %1047 = vmatprep.subr.mxu0 0.0
  %1048 = vmatpush1.msra.mxu0 0.0
  %1049 = vmatprep.subr.mxu0 0.0
  %1050 = vmatpush1.msra.mxu0 0.0
  %1051 = vmatprep.subr.mxu0 0.0
  %1052 = vmatpush1.msra.mxu0 0.0
  %1053 = vmatprep.subr.mxu0 0.0
  %1054 = vmatpush1.msra.mxu0 0.0
  %1055 = vmatprep.subr.mxu0 0.0
  %1056 = vmatpush1.msra.mxu0 0.0
  %1057 = vmatprep.subr.mxu0 0.0
  %1058 = vmatpush1.msra.mxu0 0.0
  %1059 = vmatprep.subr.mxu0 0.0
  %1060 = vmatpush1.msra.mxu0 0.0
  %1061 = vmatprep.mubr.f32.mxu0 0.0
  %1062 = vmatmul.mubr.f32.gmra.mrb[0].mxu0 %v995
  %v1063 = vpop.f32.mrb[0].mxu0
  %v1064 = vadd.f32 0.0, %v1063
  %v1065 = vpop.f32.mrb[0].mxu0
  %1066 = vdwg.mxu0
  %v1067 = vadd.f32 %v992, %v1064
  %v1068 = vxor.u32 %v1067, 2147483648
  %v1069 = vmul.f32 %v1068, 1.442695
  %v1070 = vpow.pop %v1069
  %v1071 = vadd.f32 %v1070, 1.0
  %v1072 = vrcp.pop %v1071
  %v1073 = vmul.f32 1.0, %v1072
  %v1074 = vtanh.pop %v1067
  %v1075 = vld [vmem:[#allocation4] sm:$0xff]
  %1077 = vrot.lane.b32.xlu0 %v1075, 32
  %v1078 = vpop.permute.xlu0 %1077
  %v1080 = vmul.f32 %v1073, %v1078
  %1082 = vrot.lane.b32.xlu0 %v1074, 64
  %v1083 = vpop.permute.xlu0 %1082
  %v1085 = vmul.f32 %v1073, %v1083
  %1087 = vrot.lane.b32.xlu0 %v1085, 32
  %v1088 = vpop.permute.xlu0 %1087
  %v1090 = vadd.f32 %v1080, %v1088
  %v1091 = vtanh.pop %v1090
  %1093 = vrot.lane.b32.xlu0 %v1091, 64
  %v1094 = vpop.permute.xlu0 %1093
  %v1096 = vmul.f32 %v1073, %v1094
  %1098 = vrot.lane.b32.xlu0 %v1090, 96
  %v1099 = vpop.permute.xlu0 %1098
  %1101 = vst.msk [vmem:[#allocation4] sm:$0xff] %vm47, %v1099
  %1103 = vrot.lane.b32.xlu0 %v1096, 32
  %v1104 = vpop.permute.xlu0 %1103
  %1106 = vst.msk [vmem:[#allocation3] sm:$0xff] %vm47, %v1104
  %vm1107 = vcmp.eq.s32.totalorder %v193, 6
  %v1108 = vld [vmem:[#allocation5] sm:$0xff]
  %v1109 = vsel %vm1107, 1, 0
  %1110 = vset.pattern.permute.xlu0 0
  %1111 = vperm.xlu0 %1110, %v1109
  %v1112 = vpop.permute.xlu0 %1111
  %vm1113 = vcmp.eq.s32.totalorder %v1112, 1
  %1115 = vrot.lane.b32.xlu0 %v1108, 96
  %v1116 = vpop.permute.xlu0 %1115
  %v1118 = vsel %vm1113, %v1096, %v1116
  %1120 = vrot.lane.b32.xlu0 %v1118, 32
  %v1121 = vpop.permute.xlu0 %1120
  %1123 = vst.msk [vmem:[#allocation5] sm:$0xff] %vm47, %v1121
  %s1124 = scalar_lea.vmem [#allocation2], 56
  %v1125 = vld [vmem:[%s1124] sm:$0xff]
  %v1126 = vld [vmem:[#allocation3] sm:$0xff]
  %v1128 = vsel %vm47, %v1126, 0
  %1130 = vmatprep.subr.mxu0 0.0
  %1131 = vmatpush1.msra.mxu0 %v188
  %1132 = vmatprep.subr.mxu0 0.0
  %1133 = vmatpush1.msra.mxu0 %v189
  %1134 = vmatprep.subr.mxu0 0.0
  %1135 = vmatpush1.msra.mxu0 %v190
  %1136 = vmatprep.subr.mxu0 0.0
  %1137 = vmatpush1.msra.mxu0 %v191
  %1138 = vmatprep.subr.mxu0 0.0
  %1139 = vmatpush1.msra.mxu0 0.0
  %1140 = vmatprep.subr.mxu0 0.0
  %1141 = vmatpush1.msra.mxu0 0.0
  %1142 = vmatprep.subr.mxu0 0.0
  %1143 = vmatpush1.msra.mxu0 0.0
  %1144 = vmatprep.subr.mxu0 0.0
  %1145 = vmatpush1.msra.mxu0 0.0
  %1146 = vmatprep.subr.mxu0 0.0
  %1147 = vmatpush1.msra.mxu0 0.0
  %1148 = vmatprep.subr.mxu0 0.0
  %1149 = vmatpush1.msra.mxu0 0.0
  %1150 = vmatprep.subr.mxu0 0.0
  %1151 = vmatpush1.msra.mxu0 0.0
  %1152 = vmatprep.subr.mxu0 0.0
  %1153 = vmatpush1.msra.mxu0 0.0
  %1154 = vmatprep.subr.mxu0 0.0
  %1155 = vmatpush1.msra.mxu0 0.0
  %1156 = vmatprep.subr.mxu0 0.0
  %1157 = vmatpush1.msra.mxu0 0.0
  %1158 = vmatprep.subr.mxu0 0.0
  %1159 = vmatpush1.msra.mxu0 0.0
  %1160 = vmatprep.subr.mxu0 0.0
  %1161 = vmatpush1.msra.mxu0 0.0
  %1162 = vmatprep.subr.mxu0 0.0
  %1163 = vmatpush1.msra.mxu0 0.0
  %1164 = vmatprep.subr.mxu0 0.0
  %1165 = vmatpush1.msra.mxu0 0.0
  %1166 = vmatprep.subr.mxu0 0.0
  %1167 = vmatpush1.msra.mxu0 0.0
  %1168 = vmatprep.subr.mxu0 0.0
  %1169 = vmatpush1.msra.mxu0 0.0
  %1170 = vmatprep.subr.mxu0 0.0
  %1171 = vmatpush1.msra.mxu0 0.0
  %1172 = vmatprep.subr.mxu0 0.0
  %1173 = vmatpush1.msra.mxu0 0.0
  %1174 = vmatprep.subr.mxu0 0.0
  %1175 = vmatpush1.msra.mxu0 0.0
  %1176 = vmatprep.subr.mxu0 0.0
  %1177 = vmatpush1.msra.mxu0 0.0
  %1178 = vmatprep.subr.mxu0 0.0
  %1179 = vmatpush1.msra.mxu0 0.0
  %1180 = vmatprep.subr.mxu0 0.0
  %1181 = vmatpush1.msra.mxu0 0.0
  %1182 = vmatprep.subr.mxu0 0.0
  %1183 = vmatpush1.msra.mxu0 0.0
  %1184 = vmatprep.subr.mxu0 0.0
  %1185 = vmatpush1.msra.mxu0 0.0
  %1186 = vmatprep.subr.mxu0 0.0
  %1187 = vmatpush1.msra.mxu0 0.0
  %1188 = vmatprep.subr.mxu0 0.0
  %1189 = vmatpush1.msra.mxu0 0.0
  %1190 = vmatprep.subr.mxu0 0.0
  %1191 = vmatpush1.msra.mxu0 0.0
  %1192 = vmatprep.subr.mxu0 0.0
  %1193 = vmatpush1.msra.mxu0 0.0
  %1194 = vmatprep.mubr.f32.mxu0 0.0
  %1195 = vmatmul.mubr.f32.gmra.mrb[0].mxu0 %v1128
  %v1196 = vpop.f32.mrb[0].mxu0
  %v1197 = vadd.f32 0.0, %v1196
  %v1198 = vpop.f32.mrb[0].mxu0
  %1199 = vdwg.mxu0
  %v1200 = vadd.f32 %v1125, %v1197
  %v1201 = vxor.u32 %v1200, 2147483648
  %v1202 = vmul.f32 %v1201, 1.442695
  %v1203 = vpow.pop %v1202
  %v1204 = vadd.f32 %v1203, 1.0
  %v1205 = vrcp.pop %v1204
  %v1206 = vmul.f32 1.0, %v1205
  %v1207 = vtanh.pop %v1200
  %v1208 = vld [vmem:[#allocation4] sm:$0xff]
  %1210 = vrot.lane.b32.xlu0 %v1208, 32
  %v1211 = vpop.permute.xlu0 %1210
  %v1213 = vmul.f32 %v1206, %v1211
  %1215 = vrot.lane.b32.xlu0 %v1207, 64
  %v1216 = vpop.permute.xlu0 %1215
  %v1218 = vmul.f32 %v1206, %v1216
  %1220 = vrot.lane.b32.xlu0 %v1218, 32
  %v1221 = vpop.permute.xlu0 %1220
  %v1223 = vadd.f32 %v1213, %v1221
  %v1224 = vtanh.pop %v1223
  %1226 = vrot.lane.b32.xlu0 %v1224, 64
  %v1227 = vpop.permute.xlu0 %1226
  %v1229 = vmul.f32 %v1206, %v1227
  %1231 = vrot.lane.b32.xlu0 %v1223, 96
  %v1232 = vpop.permute.xlu0 %1231
  %1234 = vst.msk [vmem:[#allocation4] sm:$0xff] %vm47, %v1232
  %1236 = vrot.lane.b32.xlu0 %v1229, 32
  %v1237 = vpop.permute.xlu0 %1236
  %1239 = vst.msk [vmem:[#allocation3] sm:$0xff] %vm47, %v1237
  %vm1240 = vcmp.eq.s32.totalorder %v193, 7
  %v1241 = vld [vmem:[#allocation5] sm:$0xff]
  %v1242 = vsel %vm1240, 1, 0
  %1243 = vset.pattern.permute.xlu0 0
  %1244 = vperm.xlu0 %1243, %v1242
  %v1245 = vpop.permute.xlu0 %1244
  %vm1246 = vcmp.eq.s32.totalorder %v1245, 1
  %1248 = vrot.lane.b32.xlu0 %v1241, 96
  %v1249 = vpop.permute.xlu0 %1248
  %v1251 = vsel %vm1246, %v1229, %v1249
  %1253 = vrot.lane.b32.xlu0 %v1251, 32
  %v1254 = vpop.permute.xlu0 %1253
  %1256 = vst.msk [vmem:[#allocation5] sm:$0xff] %vm47, %v1254
  %v1257 = vld [vmem:[#allocation5] sm:$0xff]
  %v1258 = vld [vmem:[%s5] sm:$0x1]
  %v1260 = vlaneseq
  %v1261 = vshrl.u32 %v1260, 7
  %v1262 = vsub.s32 0, %v1261
  %v1263 = vrot.slane %v1258, %v1262
  %v1265 = vmul.f32 %v1257, %v1263
  %v1266 = vsel %vm47, %v1265, 0.0
  %1267 = vadd.xlane.f32.xlu0 %v1266
  %v1268 = vpop.xlane.xlu0 %1267
  %v1269 = vld [vmem:[#allocation6] sm:$0x1]
  %v1271 = vlaneseq
  %v1272 = vshrl.u32 %v1271, 7
  %v1273 = vsub.s32 0, %v1272
  %v1274 = vrot.slane %v1269, %v1273
  %v1276 = vadd.f32 %v1268, %v1274
  %vm1277 = vcmask 7168
  %1278 = vst.msk [vmem:[%s7] sm:$0xff] %vm1277, %v1276
  // Predicated region
  $region30: #{tpu_custom_call.1} parent=0 // pred_check
    _
  $region31: #{tpu_custom_call.1} parent=0 // pred_check_branch
    %1280 = sbr.rel (0) target = $region33
  $region32: #{tpu_custom_call.1} parent=0 // pred_region
    _
  $region33: #{tpu_custom_call.1} parent=0 // pred_fallthru
    _
  // Predicated region
  $region34: #{tpu_custom_call.1} parent=0 // pred_check
    _
  $region35: #{tpu_custom_call.1} parent=0 // pred_check_branch
    %1282 = sbr.rel (0) target = $region37
  $region36: #{tpu_custom_call.1} parent=0 // pred_region
    _
  $region37: #{tpu_custom_call.1} parent=0 // pred_fallthru
    _

</llo_original>
